<compile_context>
chip_gen: v6e
topology: v6e:2x2x1
jax: 0.10.0
libtpu: 0.0.40
codegen_flags: <defaults>
</compile_context>

<pallas_src>
import math
from functools import partial

import jax
import jax.numpy as jnp
from jax.experimental import pallas as pl
from jax.experimental.pallas import tpu as pltpu

PROTO_DIM = 8                      # external constant in the source repo; kept small
N_HOSTS = 16
N_E = N_HOSTS * PROTO_DIM          # 128   (flattened prototype embeddings)
N_S = N_HOSTS * N_HOSTS            # 256   (flattened 16x16 state)
N_IN = N_E + N_S                   # 384   (Linear-1 fan-in in the module)
HID = 64                           # module hidden width
HID_PAD = 128                      # zero-padded hidden -> one lane-dense vreg / full MXU pass

_TM_MAX = 1024                     # ~5 MiB of double-buffered activation tiles; sweepable


def gen16_kernel(e_ref, s_ref, w1e_ref, w1s_ref, b1_ref, w2_ref, b2_ref, o_ref, *,
                 matmul_dtype):
    # Two MXU dots replace the single K=384 dot on the concatenated input
    # (same MXU pushes, no wrapper-side concat / extra HBM round-trip).
    s_in = s_ref[...]                                   # f32, reused for the residual
    e_op = e_ref[...].astype(matmul_dtype)              # bf16 on v5e, no-op cast on v6e/v7x
    s_op = s_in.astype(matmul_dtype)
    h = jnp.dot(e_op, w1e_ref[...], preferred_element_type=jnp.float32)      # (TM, 128)
    h = h + jnp.dot(s_op, w1s_ref[...], preferred_element_type=jnp.float32)
    h = h + b1_ref[...]
    # NOTE: nn.LeakyReLU(True) == negative_slope 1.0 == identity, so no activation op here.
    # TODO(synk): if the original author meant LeakyReLU(inplace=True) with slope 0.01,
    #             reinstate `h = jnp.where(h >= 0, h, 0.01 * h)` here and in the reference.
    y = jnp.dot(h.astype(matmul_dtype), w2_ref[...],
                preferred_element_type=jnp.float32)                          # (TM, 256)
    # s tile is aliased to the output -> in-place state update; lane-dense 256-wide store.
    o_ref[...] = s_in + 4.0 * jnp.tanh(y + b2_ref[...])


def _pad_hidden(w1_e, w1_s, b1, w2):
    """Zero-pad the hidden dim 64 -> 128. Exact: padded bias is 0 so padded h is 0,
    and padded w2 rows are 0 so they contribute nothing to the output."""
    pad = HID_PAD - HID
    w1_e_p = jnp.pad(w1_e.astype(jnp.float32), ((0, 0), (0, pad)))
    w1_s_p = jnp.pad(w1_s.astype(jnp.float32), ((0, 0), (0, pad)))
    b1_p = jnp.pad(b1.reshape(-1).astype(jnp.float32), ((0, pad),)).reshape(1, HID_PAD)
    w2_p = jnp.pad(w2.astype(jnp.float32), ((0, pad), (0, 0)))
    return w1_e_p, w1_s_p, b1_p, w2_p


def _pick_tm(batch):
    """Row tile: as large as practical, multiple of 8 (sublane), and >= 2 grid tiles
    whenever the batch allows it so the 'parallel' axis keeps both v7x TCs busy."""
    if batch <= 16:
        return batch                       # one tile whose row count equals the batch dim
    half = pl.cdiv(batch, 2)               # keep at least 2 grid steps
    tm = pl.cdiv(half, 8) * 8              # sublane (8) alignment
    return min(_TM_MAX, tm)


def _default_matmul_dtype():
    """bf16 operands on v5e (f32 MXU is at the compute/memory crossover there),
    f32 everywhere else (already HBM-bound on v6e/v7x)."""
    try:
        kind = jax.devices()[0].device_kind.lower()
    except Exception:  # pragma: no cover - no device info
        return jnp.float32
    if ("v5 lite" in kind) or ("v5e" in kind) or ("v5litepod" in kind):
        return jnp.bfloat16
    return jnp.float32


def _vmem_limit_bytes(tm, matmul_dtype, single_buffer_weights):
    """Explicit VMEM budget: double-buffered e/s/out row tiles (f32) + weights/biases
    (single- or double-buffered) + 50% & 2 MiB headroom for compiler scratch."""
    act_bytes = 2 * tm * (N_E + 2 * N_S) * 4
    w_item = jnp.dtype(matmul_dtype).itemsize
    w_bytes = (N_E * HID_PAD + N_S * HID_PAD + HID_PAD * N_S) * w_item + (HID_PAD + N_S) * 4
    n_w_buf = 1 if single_buffer_weights else 2
    total = act_bytes + n_w_buf * w_bytes
    return int(total * 1.5) + (2 << 20)


@partial(jax.jit, static_argnames=("tm", "matmul_dtype", "single_buffer_weights"))
def _gen16_forward_impl(e, s, w1, b1, w2, b2, *, tm, matmul_dtype, single_buffer_weights):
    B = e.shape[0]
    e2 = e.reshape(B, N_E).astype(jnp.float32)
    s2 = s.reshape(B, N_S).astype(jnp.float32)

    # Split the module's single (384, 64) weight into e-rows / s-rows, pad hidden to 128.
    w1_e, w1_s, b1p, w2p = _pad_hidden(w1[:N_E], w1[N_E:], b1, w2)
    b2p = b2.reshape(1, N_S).astype(jnp.float32)
    if jnp.dtype(matmul_dtype) != jnp.dtype(jnp.float32):
        w1_e = w1_e.astype(matmul_dtype)
        w1_s = w1_s.astype(matmul_dtype)
        w2p = w2p.astype(matmul_dtype)

    n_tiles = pl.cdiv(B, tm)   # last tile may be partial; Pallas boundary handling covers it

    # Weights/biases: constant index_maps -> fetched once and kept VMEM-resident.
    w_kwargs = {"pipeline_mode": pl.Buffered(1)} if single_buffer_weights else {}
    weight_specs = [
        pl.BlockSpec((N_E, HID_PAD), lambda i: (0, 0), **w_kwargs),      # w1_e
        pl.BlockSpec((N_S, HID_PAD), lambda i: (0, 0), **w_kwargs),      # w1_s
        pl.BlockSpec((1, HID_PAD), lambda i: (0, 0), **w_kwargs),        # b1
        pl.BlockSpec((HID_PAD, N_S), lambda i: (0, 0), **w_kwargs),      # w2
        pl.BlockSpec((1, N_S), lambda i: (0, 0), **w_kwargs),            # b2
    ]

    out = pl.pallas_call(
        partial(gen16_kernel, matmul_dtype=matmul_dtype),
        out_shape=jax.ShapeDtypeStruct((B, N_S), jnp.float32),
        grid_spec=pltpu.PrefetchScalarGridSpec(
            num_scalar_prefetch=0,
            grid=(n_tiles,),
            in_specs=[
                pl.BlockSpec((tm, N_E), lambda i: (i, 0)),               # e rows
                pl.BlockSpec((tm, N_S), lambda i: (i, 0)),               # s rows (aliased to out)
                *weight_specs,
            ],
            out_specs=pl.BlockSpec((tm, N_S), lambda i: (i, 0)),         # lane-dense 256-wide out
        ),
        compiler_params=pltpu.CompilerParams(
            dimension_semantics=("parallel",),                           # megacore sharding on v7x
            vmem_limit_bytes=_vmem_limit_bytes(tm, matmul_dtype, single_buffer_weights),
        ),
        input_output_aliases={1: 0},                                     # in-place state update
    )(e2, s2, w1_e, w1_s, b1p, w2p, b2p)

    return out.reshape(B, N_HOSTS, N_HOSTS)


def gen16_forward(e, s, w1, b1, w2, b2, *, tm=None, matmul_dtype=None):
    """Batched state update.

    e : (B, 16, PROTO_DIM) f32   prototype embedding per host
    s : (B, 16, 16)        f32   host-to-host state matrix
    w1: (384, 64)  b1: (64,)  w2: (64, 256)  b2: (256,)   (module layout, x @ w)
    returns (B, 16, 16) f32 :  s + 4 * tanh(Linear2(Linear1([e, s])))
    """
    if tm is None:
        tm = _pick_tm(e.shape[0])
    if matmul_dtype is None:
        matmul_dtype = _default_matmul_dtype()
    try:
        return _gen16_forward_impl(e, s, w1, b1, w2, b2, tm=tm,
                                   matmul_dtype=matmul_dtype, single_buffer_weights=True)
    except Exception:
        # pipeline_mode=pl.Buffered(1) not supported by this JAX/Mosaic build: fall back
        # to default double-buffered weights (identical numerics, ~0.33 MiB extra VMEM).
        return _gen16_forward_impl(e, s, w1, b1, w2, b2, tm=tm,
                                   matmul_dtype=matmul_dtype, single_buffer_weights=False)


def init_params(key):
    """Deterministic init mimicking nn.Linear defaults (uniform(+/- 1/sqrt(fan_in)))."""
    k1, k2, k3, k4 = jax.random.split(key, 4)
    lim1 = 1.0 / math.sqrt(N_IN)
    lim2 = 1.0 / math.sqrt(HID)
    w1 = jax.random.uniform(k1, (N_IN, HID), jnp.float32, -lim1, lim1)   # (in, out): x @ w1
    b1 = jax.random.uniform(k2, (HID,), jnp.float32, -lim1, lim1)
    w2 = jax.random.uniform(k3, (HID, N_S), jnp.float32, -lim2, lim2)
    b2 = jax.random.uniform(k4, (N_S,), jnp.float32, -lim2, lim2)
    return w1, b1, w2, b2


# TODO(synk): the GAT/dgl graph conv, MultiheadAttention history fusion and the
#             TransformerEncoder/Decoder stacks of TransformerPro_16 have no clean
#             single-kernel Pallas equivalent here; only the prototype->state MLP head
#             is implemented as a fused kernel.

if __name__ == "__main__":
    key = jax.random.PRNGKey(0)
    ke, ks, kp = jax.random.split(key, 3)
    w1, b1, w2, b2 = init_params(kp)

    mm_dtype = _default_matmul_dtype()
    if jnp.dtype(mm_dtype) == jnp.dtype(jnp.float32):
        atol, rtol = 1e-5, 1e-5
    else:                                  # bf16-operand path on v5e: f32 accumulation,
        atol, rtol = 5e-2, 2e-2            # ~1e-2 abs error after the 4*tanh amplification

    # B=200 exercises >=2 grid tiles + a partial boundary tile (no wrapper pad/slice);
    # B=6 exercises the tiny single-tile path (block rows == full batch dim).
    for B in (200, 6):
        e = jax.random.normal(jax.random.fold_in(ke, B), (B, N_HOSTS, PROTO_DIM), jnp.float32)
        s = jax.random.normal(jax.random.fold_in(ks, B), (B, N_HOSTS, N_HOSTS), jnp.float32)

        out = jax.block_until_ready(gen16_forward(e, s, w1, b1, w2, b2, matmul_dtype=mm_dtype))

        # pure-JAX reference of the module math (concat -> Linear(384,64) -> identity
        # LeakyReLU -> Linear(64,256) -> tanh; s + 4*delta), unsplit / unpadded weights.
        x = jnp.concatenate([e.reshape(B, -1), s.reshape(B, -1)], axis=1)
        h = x @ w1 + b1
        ref = s + 4.0 * jnp.tanh(h @ w2 + b2).reshape(B, N_HOSTS, N_HOSTS)

        assert out.shape == (B, N_HOSTS, N_HOSTS)
        assert jnp.allclose(out, ref, atol=atol, rtol=rtol), float(jnp.max(jnp.abs(out - ref)))

    print("KERNEL_OK")
</pallas_src>

<mosaic_0001>
module attributes {stable_mosaic.version = 11 : i64} {
  func.func @gen16_kernel(%arg0: i32, %arg1: memref<104x128xf32, #tpu.memory_space<vmem>>, %arg2: memref<104x256xf32, #tpu.memory_space<vmem>>, %arg3: memref<128x128xf32, #tpu.memory_space<vmem>>, %arg4: memref<256x128xf32, #tpu.memory_space<vmem>>, %arg5: memref<1x128xf32, #tpu.memory_space<vmem>>, %arg6: memref<128x256xf32, #tpu.memory_space<vmem>>, %arg7: memref<1x256xf32, #tpu.memory_space<vmem>>, %arg8: memref<104x256xf32, #tpu.memory_space<vmem>>) attributes {dimension_semantics = [#tpu.dimension_semantics<parallel>], iteration_bounds = array<i64: 2>, scalar_prefetch = 0 : i64, scratch_operands = 0 : i64, tpu.core_type = #tpu.core_type<tc>, window_params = [{transform_indices = @transform_0, window_bounds = array<i64: 104, 128>}, {transform_indices = @transform_1, window_bounds = array<i64: 104, 256>}, {pipeline_mode = #tpu.pipeline_mode<synchronous>, transform_indices = @transform_2, window_bounds = array<i64: 128, 128>}, {pipeline_mode = #tpu.pipeline_mode<synchronous>, transform_indices = @transform_3, window_bounds = array<i64: 256, 128>}, {pipeline_mode = #tpu.pipeline_mode<synchronous>, transform_indices = @transform_4, window_bounds = array<i64: 1, 128>}, {pipeline_mode = #tpu.pipeline_mode<synchronous>, transform_indices = @transform_5, window_bounds = array<i64: 128, 256>}, {pipeline_mode = #tpu.pipeline_mode<synchronous>, transform_indices = @transform_6, window_bounds = array<i64: 1, 256>}, {transform_indices = @transform_7, window_bounds = array<i64: 104, 256>}]} {
    %c0 = arith.constant 0 : index
    %c0_0 = arith.constant 0 : index
    %0 = vector.load %arg2[%c0, %c0_0] : memref<104x256xf32, #tpu.memory_space<vmem>>, vector<104x256xf32>
    %c0_1 = arith.constant 0 : index
    %c0_2 = arith.constant 0 : index
    %1 = vector.load %arg1[%c0_1, %c0_2] : memref<104x128xf32, #tpu.memory_space<vmem>>, vector<104x128xf32>
    %c0_3 = arith.constant 0 : index
    %c0_4 = arith.constant 0 : index
    %2 = vector.load %arg3[%c0_3, %c0_4] : memref<128x128xf32, #tpu.memory_space<vmem>>, vector<128x128xf32>
    %cst = arith.constant dense<0.000000e+00> : vector<104x128xf32>
    %3 = tpu.matmul %1, %2, %cst {dimension_numbers = #tpu.dot_dimension_numbers<[1], [0], [0], [1], [0, 0, 1, 1], [], []>} : vector<104x128xf32>, vector<128x128xf32>, vector<104x128xf32> -> vector<104x128xf32>
    %c0_5 = arith.constant 0 : index
    %c0_6 = arith.constant 0 : index
    %4 = vector.load %arg4[%c0_5, %c0_6] : memref<256x128xf32, #tpu.memory_space<vmem>>, vector<256x128xf32>
    %cst_7 = arith.constant dense<0.000000e+00> : vector<104x128xf32>
    %5 = tpu.matmul %0, %4, %cst_7 {dimension_numbers = #tpu.dot_dimension_numbers<[1], [0], [0], [1], [0, 0, 1, 1], [], []>} : vector<104x256xf32>, vector<256x128xf32>, vector<104x128xf32> -> vector<104x128xf32>
    %6 = arith.addf %3, %5 : vector<104x128xf32>
    %c0_8 = arith.constant 0 : index
    %c0_9 = arith.constant 0 : index
    %7 = vector.load %arg5[%c0_8, %c0_9] : memref<1x128xf32, #tpu.memory_space<vmem>>, vector<1x128xf32>
    %8 = vector.broadcast %7 : vector<1x128xf32> to vector<104x128xf32>
    %9 = arith.addf %6, %8 : vector<104x128xf32>
    %c0_10 = arith.constant 0 : index
    %c0_11 = arith.constant 0 : index
    %10 = vector.load %arg6[%c0_10, %c0_11] : memref<128x256xf32, #tpu.memory_space<vmem>>, vector<128x256xf32>
    %cst_12 = arith.constant dense<0.000000e+00> : vector<104x256xf32>
    %11 = tpu.matmul %9, %10, %cst_12 {dimension_numbers = #tpu.dot_dimension_numbers<[1], [0], [0], [1], [0, 0, 1, 1], [], []>} : vector<104x128xf32>, vector<128x256xf32>, vector<104x256xf32> -> vector<104x256xf32>
    %c0_13 = arith.constant 0 : index
    %c0_14 = arith.constant 0 : index
    %12 = vector.load %arg7[%c0_13, %c0_14] : memref<1x256xf32, #tpu.memory_space<vmem>>, vector<1x256xf32>
    %13 = vector.broadcast %12 : vector<1x256xf32> to vector<104x256xf32>
    %14 = arith.addf %11, %13 : vector<104x256xf32>
    %15 = math.tanh %14 : vector<104x256xf32>
    %cst_15 = arith.constant 4.000000e+00 : f32
    %16 = vector.broadcast %cst_15 : f32 to vector<104x256xf32>
    %17 = arith.mulf %16, %15 : vector<104x256xf32>
    %18 = arith.addf %0, %17 : vector<104x256xf32>
    %c0_16 = arith.constant 0 : index
    %c0_17 = arith.constant 0 : index
    %19 = vector.load %arg8[%c0_16, %c0_17] : memref<104x256xf32, #tpu.memory_space<vmem>>, vector<104x256xf32>
    tpu.vector_store %arg8[%c0_16, %c0_17], %18 {strides = array<i32>} : memref<104x256xf32, #tpu.memory_space<vmem>>, vector<104x256xf32>,
    return
  }
  func.func @transform_0(%arg0: i32) -> (i32, i32) {
    %c0_i32 = arith.constant 0 : i32
    %c0_i32_0 = arith.constant 0 : i32
    return %arg0, %c0_i32 : i32, i32
  }
  func.func @transform_1(%arg0: i32) -> (i32, i32) {
    %c0_i32 = arith.constant 0 : i32
    %c0_i32_0 = arith.constant 0 : i32
    return %arg0, %c0_i32 : i32, i32
  }
  func.func @transform_2(%arg0: i32) -> (i32, i32) {
    %c0_i32 = arith.constant 0 : i32
    %c0_i32_0 = arith.constant 0 : i32
    %c0_i32_1 = arith.constant 0 : i32
    return %c0_i32, %c0_i32_0 : i32, i32
  }
  func.func @transform_3(%arg0: i32) -> (i32, i32) {
    %c0_i32 = arith.constant 0 : i32
    %c0_i32_0 = arith.constant 0 : i32
    %c0_i32_1 = arith.constant 0 : i32
    return %c0_i32, %c0_i32_0 : i32, i32
  }
  func.func @transform_4(%arg0: i32) -> (i32, i32) {
    %c0_i32 = arith.constant 0 : i32
    %c0_i32_0 = arith.constant 0 : i32
    %c0_i32_1 = arith.constant 0 : i32
    return %c0_i32, %c0_i32_0 : i32, i32
  }
  func.func @transform_5(%arg0: i32) -> (i32, i32) {
    %c0_i32 = arith.constant 0 : i32
    %c0_i32_0 = arith.constant 0 : i32
    %c0_i32_1 = arith.constant 0 : i32
    return %c0_i32, %c0_i32_0 : i32, i32
  }
  func.func @transform_6(%arg0: i32) -> (i32, i32) {
    %c0_i32 = arith.constant 0 : i32
    %c0_i32_0 = arith.constant 0 : i32
    %c0_i32_1 = arith.constant 0 : i32
    return %c0_i32, %c0_i32_0 : i32, i32
  }
  func.func @transform_7(%arg0: i32) -> (i32, i32) {
    %c0_i32 = arith.constant 0 : i32
    %c0_i32_0 = arith.constant 0 : i32
    return %arg0, %c0_i32 : i32, i32
  }
}

module attributes {stable_mosaic.version = 11 : i64} {
  func.func @gen16_kernel(%arg0: i32, %arg1: memref<104x128xf32, #tpu.memory_space<vmem>>, %arg2: memref<104x256xf32, #tpu.memory_space<vmem>>, %arg3: memref<128x128xf32, #tpu.memory_space<vmem>>, %arg4: memref<256x128xf32, #tpu.memory_space<vmem>>, %arg5: memref<1x128xf32, #tpu.memory_space<vmem>>, %arg6: memref<128x256xf32, #tpu.memory_space<vmem>>, %arg7: memref<1x256xf32, #tpu.memory_space<vmem>>, %arg8: memref<104x256xf32, #tpu.memory_space<vmem>>) attributes {dimension_semantics = [#tpu.dimension_semantics<parallel>], iteration_bounds = array<i64: 2>, scalar_prefetch = 0 : i64, scratch_operands = 0 : i64, tpu.core_type = #tpu.core_type<tc>, window_params = [{transform_indices = @transform_0, window_bounds = array<i64: 104, 128>}, {transform_indices = @transform_1, window_bounds = array<i64: 104, 256>}, {pipeline_mode = #tpu.pipeline_mode<synchronous>, transform_indices = @transform_2, window_bounds = array<i64: 128, 128>}, {pipeline_mode = #tpu.pipeline_mode<synchronous>, transform_indices = @transform_3, window_bounds = array<i64: 256, 128>}, {pipeline_mode = #tpu.pipeline_mode<synchronous>, transform_indices = @transform_4, window_bounds = array<i64: 1, 128>}, {pipeline_mode = #tpu.pipeline_mode<synchronous>, transform_indices = @transform_5, window_bounds = array<i64: 128, 256>}, {pipeline_mode = #tpu.pipeline_mode<synchronous>, transform_indices = @transform_6, window_bounds = array<i64: 1, 256>}, {transform_indices = @transform_7, window_bounds = array<i64: 104, 256>}]} {
    %c0 = arith.constant 0 : index
    %c0_0 = arith.constant 0 : index
    %0 = vector.load %arg2[%c0, %c0_0] : memref<104x256xf32, #tpu.memory_space<vmem>>, vector<104x256xf32>
    %c0_1 = arith.constant 0 : index
    %c0_2 = arith.constant 0 : index
    %1 = vector.load %arg1[%c0_1, %c0_2] : memref<104x128xf32, #tpu.memory_space<vmem>>, vector<104x128xf32>
    %c0_3 = arith.constant 0 : index
    %c0_4 = arith.constant 0 : index
    %2 = vector.load %arg3[%c0_3, %c0_4] : memref<128x128xf32, #tpu.memory_space<vmem>>, vector<128x128xf32>
    %cst = arith.constant dense<0.000000e+00> : vector<104x128xf32>
    %3 = tpu.matmul %1, %2, %cst {dimension_numbers = #tpu.dot_dimension_numbers<[1], [0], [0], [1], [0, 0, 1, 1], [], []>} : vector<104x128xf32>, vector<128x128xf32>, vector<104x128xf32> -> vector<104x128xf32>
    %c0_5 = arith.constant 0 : index
    %c0_6 = arith.constant 0 : index
    %4 = vector.load %arg4[%c0_5, %c0_6] : memref<256x128xf32, #tpu.memory_space<vmem>>, vector<256x128xf32>
    %cst_7 = arith.constant dense<0.000000e+00> : vector<104x128xf32>
    %5 = tpu.matmul %0, %4, %cst_7 {dimension_numbers = #tpu.dot_dimension_numbers<[1], [0], [0], [1], [0, 0, 1, 1], [], []>} : vector<104x256xf32>, vector<256x128xf32>, vector<104x128xf32> -> vector<104x128xf32>
    %6 = arith.addf %3, %5 : vector<104x128xf32>
    %c0_8 = arith.constant 0 : index
    %c0_9 = arith.constant 0 : index
    %7 = vector.load %arg5[%c0_8, %c0_9] : memref<1x128xf32, #tpu.memory_space<vmem>>, vector<1x128xf32>
    %8 = vector.broadcast %7 : vector<1x128xf32> to vector<104x128xf32>
    %9 = arith.addf %6, %8 : vector<104x128xf32>
    %c0_10 = arith.constant 0 : index
    %c0_11 = arith.constant 0 : index
    %10 = vector.load %arg6[%c0_10, %c0_11] : memref<128x256xf32, #tpu.memory_space<vmem>>, vector<128x256xf32>
    %cst_12 = arith.constant dense<0.000000e+00> : vector<104x256xf32>
    %11 = tpu.matmul %9, %10, %cst_12 {dimension_numbers = #tpu.dot_dimension_numbers<[1], [0], [0], [1], [0, 0, 1, 1], [], []>} : vector<104x128xf32>, vector<128x256xf32>, vector<104x256xf32> -> vector<104x256xf32>
    %c0_13 = arith.constant 0 : index
    %c0_14 = arith.constant 0 : index
    %12 = vector.load %arg7[%c0_13, %c0_14] : memref<1x256xf32, #tpu.memory_space<vmem>>, vector<1x256xf32>
    %13 = vector.broadcast %12 : vector<1x256xf32> to vector<104x256xf32>
    %14 = arith.addf %11, %13 : vector<104x256xf32>
    %15 = math.tanh %14 : vector<104x256xf32>
    %cst_15 = arith.constant 4.000000e+00 : f32
    %16 = vector.broadcast %cst_15 : f32 to vector<104x256xf32>
    %17 = arith.mulf %16, %15 : vector<104x256xf32>
    %18 = arith.addf %0, %17 : vector<104x256xf32>
    %c0_16 = arith.constant 0 : index
    %c0_17 = arith.constant 0 : index
    %19 = vector.load %arg8[%c0_16, %c0_17] : memref<104x256xf32, #tpu.memory_space<vmem>>, vector<104x256xf32>
    tpu.vector_store %arg8[%c0_16, %c0_17], %18 {strides = array<i32>} : memref<104x256xf32, #tpu.memory_space<vmem>>, vector<104x256xf32>,
    return
  }
  func.func @transform_0(%arg0: i32) -> (i32, i32) {
    %c0_i32 = arith.constant 0 : i32
    %c0_i32_0 = arith.constant 0 : i32
    return %arg0, %c0_i32 : i32, i32
  }
  func.func @transform_1(%arg0: i32) -> (i32, i32) {
    %c0_i32 = arith.constant 0 : i32
    %c0_i32_0 = arith.constant 0 : i32
    return %arg0, %c0_i32 : i32, i32
  }
  func.func @transform_2(%arg0: i32) -> (i32, i32) {
    %c0_i32 = arith.constant 0 : i32
    %c0_i32_0 = arith.constant 0 : i32
    %c0_i32_1 = arith.constant 0 : i32
    return %c0_i32, %c0_i32_0 : i32, i32
  }
  func.func @transform_3(%arg0: i32) -> (i32, i32) {
    %c0_i32 = arith.constant 0 : i32
    %c0_i32_0 = arith.constant 0 : i32
    %c0_i32_1 = arith.constant 0 : i32
    return %c0_i32, %c0_i32_0 : i32, i32
  }
  func.func @transform_4(%arg0: i32) -> (i32, i32) {
    %c0_i32 = arith.constant 0 : i32
    %c0_i32_0 = arith.constant 0 : i32
    %c0_i32_1 = arith.constant 0 : i32
    return %c0_i32, %c0_i32_0 : i32, i32
  }
  func.func @transform_5(%arg0: i32) -> (i32, i32) {
    %c0_i32 = arith.constant 0 : i32
    %c0_i32_0 = arith.constant 0 : i32
    %c0_i32_1 = arith.constant 0 : i32
    return %c0_i32, %c0_i32_0 : i32, i32
  }
  func.func @transform_6(%arg0: i32) -> (i32, i32) {
    %c0_i32 = arith.constant 0 : i32
    %c0_i32_0 = arith.constant 0 : i32
    %c0_i32_1 = arith.constant 0 : i32
    return %c0_i32, %c0_i32_0 : i32, i32
  }
  func.func @transform_7(%arg0: i32) -> (i32, i32) {
    %c0_i32 = arith.constant 0 : i32
    %c0_i32_0 = arith.constant 0 : i32
    return %arg0, %c0_i32 : i32, i32
  }
}

</mosaic_0001>

<llo_original>
// kernel: _gen16_forward_impl.1
$region0: #{_gen16_forward_impl.1}
  #allocation0 [shape = 'u32[]', space=smem, size = 0x4, offset = 0x4, fixed_abs, tag = 'smem constant byte address 0x4 - core index']
  #allocation1 [shape = 'u32[144,128]{1,0:T(1,128)}', space=vmem, size = 0x12000, scoped, tag = 'internal scratch']
  %s0 = inlined_call_operand.vmem [shape: f32[200,128], index: 0, kind: input, shape index: {}]
  %s1 = inlined_call_operand.vmem [shape: f32[200,256], index: 1, kind: input, shape index: {}, may-alias: {1,7}]
  %s2 = inlined_call_operand.vmem [shape: f32[128,128], index: 2, kind: input, shape index: {}]
  %s3 = inlined_call_operand.vmem [shape: f32[256,128], index: 3, kind: input, shape index: {}]
  %s4 = inlined_call_operand.vmem [shape: f32[1,128], index: 4, kind: input, shape index: {}]
  %s5 = inlined_call_operand.vmem [shape: f32[128,256], index: 5, kind: input, shape index: {}]
  %s6 = inlined_call_operand.vmem [shape: f32[1,256], index: 6, kind: input, shape index: {}]
  %s7 = inlined_call_operand.vmem [shape: f32[200,256], index: 7, kind: output, shape index: {}, may-alias: {1,7}]
  %s8 = sld [smem:[#allocation0]]
  $region87: #{_gen16_forward_impl.1} parent=0
    _
  %s10 = ssub.s32 1, %s8
  %s11 = scalar_select 0, %s10, %s8
  $region1: #{_gen16_forward_impl.1} parent=0
    #allocation2 [shape = 'u8[212992]{0}', space=vmem, size = 0x34000, scoped, tag = 'output window, operand 0']
    loop: start=0, step=1, limit=4
    $region2: #{_gen16_forward_impl.1} parent=1 // loop_pre_header
      _
    $region3: #{_gen16_forward_impl.1} parent=1 // loop_header
      %s13 = sphi 0, %s17
      %p14 = scmp.ge.s32.totalorder %s13, 4
      %s23 = sphi 0, %s25
      %s26 = sphi 0, %s23
      %s27 = sphi 0, %s26
      %s43 = sphi 0, %s27
      %s49 = sphi 0, %s51
      %s52 = sphi 0, %s49
      %s53 = sphi 0, %s52
      %s69 = sphi 0, %s53
      %s73 = sphi 0, %s73
      %s75 = sphi 0, %s73
      %s76 = sphi 0, %s75
      %s90 = sphi 0, %s76
      %s94 = sphi 0, %s94
      %s96 = sphi 0, %s94
      %s97 = sphi 0, %s96
      %s111 = sphi 0, %s97
      %s115 = sphi 0, %s115
      %s117 = sphi 0, %s115
      %s118 = sphi 0, %s117
      %s132 = sphi 0, %s118
      %s136 = sphi 0, %s136
      %s138 = sphi 0, %s136
      %s139 = sphi 0, %s138
      %s153 = sphi 0, %s139
      %s157 = sphi 0, %s157
      %s159 = sphi 0, %s157
      %s160 = sphi 0, %s159
      %s174 = sphi 0, %s160
      %s180 = sphi 0, %s182
      %s183 = sphi 0, %s180
      %s184 = sphi 0, %s183
      %s200 = sphi 0, %s184
    $region4: #{_gen16_forward_impl.1} parent=1 // loop_header_branch
      %16 = sbr.rel (%p14) target = $region8
    $region5: #{_gen16_forward_impl.1} parent=1 // loop_body
      %s18 = ssub.s32 %s13, 1
      %s19 = ssub.s32 %s13, 2
      %s20 = sadd.s32 %s13, 1
      %s21 = ssub.s32 %s13, %s20
      %p22 = scmp.eq.s32.totalorder %s21, 0
      %s24 = sadd.s32 %s23, 1
      %s25 = scalar_select %p22, %s23, %s24
      %p28 = pneg %p22
      %p29 = scmp.eq.s32.totalorder %s13, 1
      %p30 = por %p28, %p29
      %p31 = scmp.ne.s32.totalorder %s23, %s26
      %p32 = scmp.eq.s32.totalorder %s13, 0
      %p33 = por %p31, %p32
      %p34 = scmp.ne.s32.totalorder %s23, %s26
      %p35 = scmp.eq.s32.totalorder %s18, 1
      %p36 = por %p34, %p35
      %p37 = scmp.ne.s32.totalorder %s26, %s27
      %p38 = scmp.eq.s32.totalorder %s18, 0
      %p39 = por %p37, %p38
      %p40 = scmp.ne.s32.totalorder %s26, %s27
      %p41 = scmp.eq.s32.totalorder %s19, 1
      %p42 = por %p40, %p41
      %p44 = scmp.ne.s32.totalorder %s27, %s43
      %p45 = scmp.eq.s32.totalorder %s19, 0
      %p46 = por %p44, %p45
      %s47 = ssub.s32 %s13, %s20
      %p48 = scmp.eq.s32.totalorder %s47, 0
      %s50 = sadd.s32 %s49, 1
      %s51 = scalar_select %p48, %s49, %s50
      %p54 = pneg %p48
      %p55 = scmp.eq.s32.totalorder %s13, 1
      %p56 = por %p54, %p55
      %p57 = scmp.ne.s32.totalorder %s49, %s52
      %p58 = scmp.eq.s32.totalorder %s13, 0
      %p59 = por %p57, %p58
      %p60 = scmp.ne.s32.totalorder %s49, %s52
      %p61 = scmp.eq.s32.totalorder %s18, 1
      %p62 = por %p60, %p61
      %p63 = scmp.ne.s32.totalorder %s52, %s53
      %p64 = scmp.eq.s32.totalorder %s18, 0
      %p65 = por %p63, %p64
      %p66 = scmp.ne.s32.totalorder %s52, %s53
      %p67 = scmp.eq.s32.totalorder %s19, 1
      %p68 = por %p66, %p67
      %p70 = scmp.ne.s32.totalorder %s53, %s69
      %p71 = scmp.eq.s32.totalorder %s19, 0
      %p72 = por %p70, %p71
      %s74 = sadd.s32 %s73, 1
      %p77 = scmp.eq.s32.totalorder %s13, 1
      %p78 = scmp.ne.s32.totalorder %s73, %s75
      %p79 = scmp.eq.s32.totalorder %s13, 0
      %p80 = por %p78, %p79
      %p81 = scmp.ne.s32.totalorder %s73, %s75
      %p82 = scmp.eq.s32.totalorder %s18, 1
      %p83 = por %p81, %p82
      %p84 = scmp.ne.s32.totalorder %s75, %s76
      %p85 = scmp.eq.s32.totalorder %s18, 0
      %p86 = por %p84, %p85
      %p87 = scmp.ne.s32.totalorder %s75, %s76
      %p88 = scmp.eq.s32.totalorder %s19, 1
      %p89 = por %p87, %p88
      %p91 = scmp.ne.s32.totalorder %s76, %s90
      %p92 = scmp.eq.s32.totalorder %s19, 0
      %p93 = por %p91, %p92
      %s95 = sadd.s32 %s94, 1
      %p98 = scmp.eq.s32.totalorder %s13, 1
      %p99 = scmp.ne.s32.totalorder %s94, %s96
      %p100 = scmp.eq.s32.totalorder %s13, 0
      %p101 = por %p99, %p100
      %p102 = scmp.ne.s32.totalorder %s94, %s96
      %p103 = scmp.eq.s32.totalorder %s18, 1
      %p104 = por %p102, %p103
      %p105 = scmp.ne.s32.totalorder %s96, %s97
      %p106 = scmp.eq.s32.totalorder %s18, 0
      %p107 = por %p105, %p106
      %p108 = scmp.ne.s32.totalorder %s96, %s97
      %p109 = scmp.eq.s32.totalorder %s19, 1
      %p110 = por %p108, %p109
      %p112 = scmp.ne.s32.totalorder %s97, %s111
      %p113 = scmp.eq.s32.totalorder %s19, 0
      %p114 = por %p112, %p113
      %s116 = sadd.s32 %s115, 1
      %p119 = scmp.eq.s32.totalorder %s13, 1
      %p120 = scmp.ne.s32.totalorder %s115, %s117
      %p121 = scmp.eq.s32.totalorder %s13, 0
      %p122 = por %p120, %p121
      %p123 = scmp.ne.s32.totalorder %s115, %s117
      %p124 = scmp.eq.s32.totalorder %s18, 1
      %p125 = por %p123, %p124
      %p126 = scmp.ne.s32.totalorder %s117, %s118
      %p127 = scmp.eq.s32.totalorder %s18, 0
      %p128 = por %p126, %p127
      %p129 = scmp.ne.s32.totalorder %s117, %s118
      %p130 = scmp.eq.s32.totalorder %s19, 1
      %p131 = por %p129, %p130
      %p133 = scmp.ne.s32.totalorder %s118, %s132
      %p134 = scmp.eq.s32.totalorder %s19, 0
      %p135 = por %p133, %p134
      %s137 = sadd.s32 %s136, 1
      %p140 = scmp.eq.s32.totalorder %s13, 1
      %p141 = scmp.ne.s32.totalorder %s136, %s138
      %p142 = scmp.eq.s32.totalorder %s13, 0
      %p143 = por %p141, %p142
      %p144 = scmp.ne.s32.totalorder %s136, %s138
      %p145 = scmp.eq.s32.totalorder %s18, 1
      %p146 = por %p144, %p145
      %p147 = scmp.ne.s32.totalorder %s138, %s139
      %p148 = scmp.eq.s32.totalorder %s18, 0
      %p149 = por %p147, %p148
      %p150 = scmp.ne.s32.totalorder %s138, %s139
      %p151 = scmp.eq.s32.totalorder %s19, 1
      %p152 = por %p150, %p151
      %p154 = scmp.ne.s32.totalorder %s139, %s153
      %p155 = scmp.eq.s32.totalorder %s19, 0
      %p156 = por %p154, %p155
      %s158 = sadd.s32 %s157, 1
      %p161 = scmp.eq.s32.totalorder %s13, 1
      %p162 = scmp.ne.s32.totalorder %s157, %s159
      %p163 = scmp.eq.s32.totalorder %s13, 0
      %p164 = por %p162, %p163
      %p165 = scmp.ne.s32.totalorder %s157, %s159
      %p166 = scmp.eq.s32.totalorder %s18, 1
      %p167 = por %p165, %p166
      %p168 = scmp.ne.s32.totalorder %s159, %s160
      %p169 = scmp.eq.s32.totalorder %s18, 0
      %p170 = por %p168, %p169
      %p171 = scmp.ne.s32.totalorder %s159, %s160
      %p172 = scmp.eq.s32.totalorder %s19, 1
      %p173 = por %p171, %p172
      %p175 = scmp.ne.s32.totalorder %s160, %s174
      %p176 = scmp.eq.s32.totalorder %s19, 0
      %p177 = por %p175, %p176
      %s178 = ssub.s32 %s13, %s20
      %p179 = scmp.eq.s32.totalorder %s178, 0
      %s181 = sadd.s32 %s180, 1
      %s182 = scalar_select %p179, %s180, %s181
      %p185 = pneg %p179
      %p186 = scmp.eq.s32.totalorder %s13, 1
      %p187 = por %p185, %p186
      %p188 = scmp.ne.s32.totalorder %s180, %s183
      %p189 = scmp.eq.s32.totalorder %s13, 0
      %p190 = por %p188, %p189
      %p191 = scmp.ne.s32.totalorder %s180, %s183
      %p192 = scmp.eq.s32.totalorder %s18, 1
      %p193 = por %p191, %p192
      %p194 = scmp.ne.s32.totalorder %s183, %s184
      %p195 = scmp.eq.s32.totalorder %s18, 0
      %p196 = por %p194, %p195
      %p197 = scmp.ne.s32.totalorder %s183, %s184
      %p198 = scmp.eq.s32.totalorder %s19, 1
      %p199 = por %p197, %p198
      %p201 = scmp.ne.s32.totalorder %s184, %s200
      %p202 = scmp.eq.s32.totalorder %s19, 0
      %p203 = por %p201, %p202
      %p204 = scmp.le.s32.totalorder 1, %s13
      %p205 = scmp.lt.s32.totalorder %s13, 3
      %p206 = pnand %p204, %p205
      %p207 = pneg %p206
      // Predicated region
      $region9: #{_gen16_forward_impl.1} parent=5 // pred_check
        _
      $region10: #{_gen16_forward_impl.1} parent=5 // pred_check_branch
        %209 = sbr.rel (%p206) target = $region12
      $region11: #{_gen16_forward_impl.1} parent=5 // pred_region
        %s210 = ssub.s32 %s13, 1
        // Predicated region
        $region13: #{_gen16_forward_impl.1} parent=11 // pred_check
          %p211 = pneg %p86
        $region14: #{_gen16_forward_impl.1} parent=11 // pred_check_branch
          %213 = sbr.rel (%p211) target = $region16
        $region15: #{_gen16_forward_impl.1} parent=11 // pred_region
          _
        $region16: #{_gen16_forward_impl.1} parent=11 // pred_fallthru
          _
        // Predicated region
        $region17: #{_gen16_forward_impl.1} parent=11 // pred_check
          %p214 = pneg %p107
        $region18: #{_gen16_forward_impl.1} parent=11 // pred_check_branch
          %216 = sbr.rel (%p214) target = $region20
        $region19: #{_gen16_forward_impl.1} parent=11 // pred_region
          _
        $region20: #{_gen16_forward_impl.1} parent=11 // pred_fallthru
          _
        // Predicated region
        $region21: #{_gen16_forward_impl.1} parent=11 // pred_check
          %p217 = pneg %p128
        $region22: #{_gen16_forward_impl.1} parent=11 // pred_check_branch
          %219 = sbr.rel (%p217) target = $region24
        $region23: #{_gen16_forward_impl.1} parent=11 // pred_region
          _
        $region24: #{_gen16_forward_impl.1} parent=11 // pred_fallthru
          _
        // Predicated region
        $region25: #{_gen16_forward_impl.1} parent=11 // pred_check
          %p220 = pneg %p149
        $region26: #{_gen16_forward_impl.1} parent=11 // pred_check_branch
          %222 = sbr.rel (%p220) target = $region28
        $region27: #{_gen16_forward_impl.1} parent=11 // pred_region
          _
        $region28: #{_gen16_forward_impl.1} parent=11 // pred_fallthru
          _
        // Predicated region
        $region29: #{_gen16_forward_impl.1} parent=11 // pred_check
          %p223 = pneg %p170
        $region30: #{_gen16_forward_impl.1} parent=11 // pred_check_branch
          %225 = sbr.rel (%p223) target = $region32
        $region31: #{_gen16_forward_impl.1} parent=11 // pred_region
          _
        $region32: #{_gen16_forward_impl.1} parent=11 // pred_fallthru
          _
      $region12: #{_gen16_forward_impl.1} parent=5 // pred_fallthru
        _
      %p226 = scmp.lt.s32.totalorder %s13, 2
      // Predicated region
      $region33: #{_gen16_forward_impl.1} parent=5 // pred_check
        %p227 = pneg %p226
      $region34: #{_gen16_forward_impl.1} parent=5 // pred_check_branch
        %229 = sbr.rel (%p227) target = $region36
      $region35: #{_gen16_forward_impl.1} parent=5 // pred_region
        // Predicated region
        $region37: #{_gen16_forward_impl.1} parent=35 // pred_check
          %p230 = pneg %p33
        $region38: #{_gen16_forward_impl.1} parent=35 // pred_check_branch
          %232 = sbr.rel (%p230) target = $region40
        $region39: #{_gen16_forward_impl.1} parent=35 // pred_region
          %s233 = smul.u32 13, %s13
          %s234 = ssub.s32 25, %s233
          %p235 = scmp.lt.s32.totalorder %s234, 13
          %s236 = scalar_select %p235, %s234, 13
          %s237 = smul.u32 128, %s236
          %p238 = scmp.lt.s32.totalorder %s233, 24
          %s239 = scalar_select %p238, %s233, 24
          %s240 = smul.addr %s239, 8
          %s241 = scalar_lea.vmem %s0, %s240
          %s242 = smul.u32 13, %s13
          %s243 = ssub.s32 25, %s242
          %p244 = scmp.lt.s32.totalorder %s243, 13
          %s245 = scalar_select %p244, %s243, 13
          %s246 = smul.u32 128, %s245
        $region40: #{_gen16_forward_impl.1} parent=35 // pred_fallthru
          _
        // Predicated region
        $region41: #{_gen16_forward_impl.1} parent=35 // pred_check
          %p247 = pneg %p59
        $region42: #{_gen16_forward_impl.1} parent=35 // pred_check_branch
          %249 = sbr.rel (%p247) target = $region44
        $region43: #{_gen16_forward_impl.1} parent=35 // pred_region
          %s250 = smul.u32 13, %s13
          %s251 = ssub.s32 25, %s250
          %p252 = scmp.lt.s32.totalorder %s251, 13
          %s253 = scalar_select %p252, %s251, 13
          %s254 = smul.u32 128, %s253
          %s255 = smul.u32 %s254, 2
          %p256 = scmp.lt.s32.totalorder %s250, 24
          %s257 = scalar_select %p256, %s250, 24
          %s258 = smul.addr %s257, 2
          %s259 = smul.addr %s258, 8
          %s260 = scalar_lea.vmem %s1, %s259
          %s261 = smul.u32 13, %s13
          %s262 = ssub.s32 25, %s261
          %p263 = scmp.lt.s32.totalorder %s262, 13
          %s264 = scalar_select %p263, %s262, 13
          %s265 = smul.u32 128, %s264
          %s266 = smul.u32 %s265, 2
        $region44: #{_gen16_forward_impl.1} parent=35 // pred_fallthru
          _
      $region36: #{_gen16_forward_impl.1} parent=5 // pred_fallthru
        _
      %p267 = scmp.le.s32.totalorder 1, %s13
      %p268 = scmp.lt.s32.totalorder %s13, 3
      %p269 = pnand %p267, %p268
      %p270 = pneg %p269
      // Predicated region
      $region45: #{_gen16_forward_impl.1} parent=5 // pred_check
        _
      $region46: #{_gen16_forward_impl.1} parent=5 // pred_check_branch
        %272 = sbr.rel (%p269) target = $region48
      $region47: #{_gen16_forward_impl.1} parent=5 // pred_region
        %s273 = ssub.s32 %s13, 1
        %s274 = smul.u32 13, %s18
        %s275 = ssub.s32 25, %s274
        %p276 = scmp.lt.s32.totalorder %s275, 13
        %s277 = scalar_select %p276, %s275, 13
        %s278 = smul.u32 128, %s277
        %p279 = scmp.lt.s32.totalorder %s274, 24
        %s280 = scalar_select %p279, %s274, 24
        %s281 = smul.addr %s280, 8
        %s282 = scalar_lea.vmem %s0, %s281
        %p283 = pneg %p39
        %p284 = pneg %p36
        %s285 = smul.u32 13, %s18
        %s286 = ssub.s32 25, %s285
        %p287 = scmp.lt.s32.totalorder %s286, 13
        %s288 = scalar_select %p287, %s286, 13
        %s289 = smul.u32 128, %s288
        %s290 = smul.u32 %s289, 2
        %p291 = scmp.lt.s32.totalorder %s285, 24
        %s292 = scalar_select %p291, %s285, 24
        %s293 = smul.addr %s292, 2
        %s294 = smul.addr %s293, 8
        %s295 = scalar_lea.vmem %s1, %s294
        %p296 = pneg %p65
        %p297 = pneg %p62
        %p298 = pneg %p86
        %p299 = pneg %p83
        %p300 = pneg %p107
        %p301 = pneg %p104
        %p302 = pneg %p128
        %p303 = pneg %p125
        %p304 = pneg %p149
        %p305 = pneg %p146
        %p306 = pneg %p170
        %p307 = pneg %p167
        %p308 = pneg %p196
        %p309 = pneg %p193
        %s310 = sand.u32 %s183, 1
        %s311 = sand.u32 %s183, 1
        %s312 = smul.addr %s311, 208
        %s313 = scalar_lea.vmem [#allocation2], %s312
        %s314 = smul.u32 13, %s18
        %s315 = ssub.s32 25, %s314
        %p316 = scmp.lt.s32.totalorder %s315, 13
        %s317 = scalar_select %p316, %s315, 13
        %s318 = smul.u32 128, %s317
        %p319 = scmp.lt.s32.totalorder %s314, 24
        %s320 = scalar_select %p319, %s314, 24
        %s321 = smul.addr %s320, 8
        %s322 = scalar_lea.vmem %s0, %s321
        %s323 = smul.u32 13, %s18
        %s324 = ssub.s32 25, %s323
        %p325 = scmp.lt.s32.totalorder %s324, 13
        %s326 = scalar_select %p325, %s324, 13
        %s327 = smul.u32 128, %s326
        %s328 = smul.u32 13, %s18
        %s329 = ssub.s32 25, %s328
        %p330 = scmp.lt.s32.totalorder %s329, 13
        %s331 = scalar_select %p330, %s329, 13
        %s332 = smul.u32 128, %s331
        %s333 = smul.u32 %s332, 2
        %p334 = scmp.lt.s32.totalorder %s328, 24
        %s335 = scalar_select %p334, %s328, 24
        %s336 = smul.addr %s335, 2
        %s337 = smul.addr %s336, 8
        %s338 = scalar_lea.vmem %s1, %s337
        %s339 = smul.u32 13, %s18
        %s340 = ssub.s32 25, %s339
        %p341 = scmp.lt.s32.totalorder %s340, 13
        %s342 = scalar_select %p341, %s340, 13
        %s343 = smul.u32 128, %s342
        %s344 = smul.u32 %s343, 2
        %s345 = smul.u32 13, %s18
        %s346 = ssub.s32 25, %s345
        %p347 = scmp.lt.s32.totalorder %s346, 13
        %s348 = scalar_select %p347, %s346, 13
        %s349 = smul.u32 128, %s348
        %s350 = smul.u32 %s349, 2
        %v351 = vld [vmem:[%s338] sm:$0xff]
        %v352 = vld [vmem:[%s338 + $0x8] sm:$0xff]
        %v353 = vld [vmem:[%s338 + $0x10] sm:$0xff]
        %v354 = vld [vmem:[%s338 + $0x18] sm:$0xff]
        %v355 = vld [vmem:[%s338 + $0x20] sm:$0xff]
        %v356 = vld [vmem:[%s338 + $0x28] sm:$0xff]
        %v357 = vld [vmem:[%s338 + $0x30] sm:$0xff]
        %v358 = vld [vmem:[%s338 + $0x38] sm:$0xff]
        %v359 = vld [vmem:[%s338 + $0x40] sm:$0xff]
        %v360 = vld [vmem:[%s338 + $0x48] sm:$0xff]
        %v361 = vld [vmem:[%s338 + $0x50] sm:$0xff]
        %v362 = vld [vmem:[%s338 + $0x58] sm:$0xff]
        %v363 = vld [vmem:[%s338 + $0x60] sm:$0xff]
        %v364 = vld [vmem:[%s338 + $0x68] sm:$0xff]
        %v365 = vld [vmem:[%s338 + $0x70] sm:$0xff]
        %v366 = vld [vmem:[%s338 + $0x78] sm:$0xff]
        %v367 = vld [vmem:[%s338 + $0x80] sm:$0xff]
        %v368 = vld [vmem:[%s338 + $0x88] sm:$0xff]
        %v369 = vld [vmem:[%s338 + $0x90] sm:$0xff]
        %v370 = vld [vmem:[%s338 + $0x98] sm:$0xff]
        %v371 = vld [vmem:[%s338 + $0xa0] sm:$0xff]
        %v372 = vld [vmem:[%s338 + $0xa8] sm:$0xff]
        %v373 = vld [vmem:[%s338 + $0xb0] sm:$0xff]
        %v374 = vld [vmem:[%s338 + $0xb8] sm:$0xff]
        %v375 = vld [vmem:[%s338 + $0xc0] sm:$0xff]
        %v376 = vld [vmem:[%s338 + $0xc8] sm:$0xff]
        %v377 = vld [vmem:[%s322] sm:$0xff]
        %v378 = vld [vmem:[%s322 + $0x8] sm:$0xff]
        %v379 = vld [vmem:[%s322 + $0x10] sm:$0xff]
        %v380 = vld [vmem:[%s322 + $0x18] sm:$0xff]
        %v381 = vld [vmem:[%s322 + $0x20] sm:$0xff]
        %v382 = vld [vmem:[%s322 + $0x28] sm:$0xff]
        %v383 = vld [vmem:[%s322 + $0x30] sm:$0xff]
        %v384 = vld [vmem:[%s322 + $0x38] sm:$0xff]
        %v385 = vld [vmem:[%s322 + $0x40] sm:$0xff]
        %v386 = vld [vmem:[%s322 + $0x48] sm:$0xff]
        %v387 = vld [vmem:[%s322 + $0x50] sm:$0xff]
        %v388 = vld [vmem:[%s322 + $0x58] sm:$0xff]
        %v389 = vld [vmem:[%s322 + $0x60] sm:$0xff]
        %v390 = vld [vmem:[%s2] sm:$0xff]
        %v391 = vld [vmem:[%s2 + $0x8] sm:$0xff]
        %v392 = vld [vmem:[%s2 + $0x10] sm:$0xff]
        %v393 = vld [vmem:[%s2 + $0x18] sm:$0xff]
        %v394 = vld [vmem:[%s2 + $0x20] sm:$0xff]
        %v395 = vld [vmem:[%s2 + $0x28] sm:$0xff]
        %v396 = vld [vmem:[%s2 + $0x30] sm:$0xff]
        %v397 = vld [vmem:[%s2 + $0x38] sm:$0xff]
        %v398 = vld [vmem:[%s2 + $0x40] sm:$0xff]
        %v399 = vld [vmem:[%s2 + $0x48] sm:$0xff]
        %v400 = vld [vmem:[%s2 + $0x50] sm:$0xff]
        %v401 = vld [vmem:[%s2 + $0x58] sm:$0xff]
        %v402 = vld [vmem:[%s2 + $0x60] sm:$0xff]
        %v403 = vld [vmem:[%s2 + $0x68] sm:$0xff]
        %v404 = vld [vmem:[%s2 + $0x70] sm:$0xff]
        %v405 = vld [vmem:[%s2 + $0x78] sm:$0xff]
        %v406 = vld [vmem:[%s3] sm:$0xff]
        %v407 = vld [vmem:[%s3 + $0x8] sm:$0xff]
        %v408 = vld [vmem:[%s3 + $0x10] sm:$0xff]
        %v409 = vld [vmem:[%s3 + $0x18] sm:$0xff]
        %v410 = vld [vmem:[%s3 + $0x20] sm:$0xff]
        %v411 = vld [vmem:[%s3 + $0x28] sm:$0xff]
        %v412 = vld [vmem:[%s3 + $0x30] sm:$0xff]
        %v413 = vld [vmem:[%s3 + $0x38] sm:$0xff]
        %v414 = vld [vmem:[%s3 + $0x40] sm:$0xff]
        %v415 = vld [vmem:[%s3 + $0x48] sm:$0xff]
        %v416 = vld [vmem:[%s3 + $0x50] sm:$0xff]
        %v417 = vld [vmem:[%s3 + $0x58] sm:$0xff]
        %v418 = vld [vmem:[%s3 + $0x60] sm:$0xff]
        %v419 = vld [vmem:[%s3 + $0x68] sm:$0xff]
        %v420 = vld [vmem:[%s3 + $0x70] sm:$0xff]
        %v421 = vld [vmem:[%s3 + $0x78] sm:$0xff]
        %v422 = vld [vmem:[%s3 + $0x80] sm:$0xff]
        %v423 = vld [vmem:[%s3 + $0x88] sm:$0xff]
        %v424 = vld [vmem:[%s3 + $0x90] sm:$0xff]
        %v425 = vld [vmem:[%s3 + $0x98] sm:$0xff]
        %v426 = vld [vmem:[%s3 + $0xa0] sm:$0xff]
        %v427 = vld [vmem:[%s3 + $0xa8] sm:$0xff]
        %v428 = vld [vmem:[%s3 + $0xb0] sm:$0xff]
        %v429 = vld [vmem:[%s3 + $0xb8] sm:$0xff]
        %v430 = vld [vmem:[%s3 + $0xc0] sm:$0xff]
        %v431 = vld [vmem:[%s3 + $0xc8] sm:$0xff]
        %v432 = vld [vmem:[%s3 + $0xd0] sm:$0xff]
        %v433 = vld [vmem:[%s3 + $0xd8] sm:$0xff]
        %v434 = vld [vmem:[%s3 + $0xe0] sm:$0xff]
        %v435 = vld [vmem:[%s3 + $0xe8] sm:$0xff]
        %v436 = vld [vmem:[%s3 + $0xf0] sm:$0xff]
        %v437 = vld [vmem:[%s3 + $0xf8] sm:$0xff]
        %438 = vmatprep.subr.mxu0 0.0
        %439 = vmatpush1.msra.mxu0 %v421
        %440 = vmatprep.subr.mxu0 0.0
        %441 = vmatpush1.msra.mxu0 %v420
        %442 = vmatprep.subr.mxu0 0.0
        %443 = vmatpush1.msra.mxu0 %v419
        %444 = vmatprep.subr.mxu0 0.0
        %445 = vmatpush1.msra.mxu0 %v418
        %446 = vmatprep.subr.mxu0 0.0
        %447 = vmatpush1.msra.mxu0 %v417
        %448 = vmatprep.subr.mxu0 0.0
        %449 = vmatpush1.msra.mxu0 %v416
        %450 = vmatprep.subr.mxu0 0.0
        %451 = vmatpush1.msra.mxu0 %v415
        %452 = vmatprep.subr.mxu0 0.0
        %453 = vmatpush1.msra.mxu0 %v414
        %454 = vmatprep.subr.mxu0 0.0
        %455 = vmatpush1.msra.mxu0 %v413
        %456 = vmatprep.subr.mxu0 0.0
        %457 = vmatpush1.msra.mxu0 %v412
        %458 = vmatprep.subr.mxu0 0.0
        %459 = vmatpush1.msra.mxu0 %v411
        %460 = vmatprep.subr.mxu0 0.0
        %461 = vmatpush1.msra.mxu0 %v410
        %462 = vmatprep.subr.mxu0 0.0
        %463 = vmatpush1.msra.mxu0 %v409
        %464 = vmatprep.subr.mxu0 0.0
        %465 = vmatpush1.msra.mxu0 %v408
        %466 = vmatprep.subr.mxu0 0.0
        %467 = vmatpush1.msra.mxu0 %v407
        %468 = vmatprep.subr.mxu0 0.0
        %469 = vmatpush1.msra.mxu0 %v406
        %470 = vmatprep.subr.mxu0 0.0
        %471 = vmatpush2.msra.mxu0 %v437
        %472 = vmatprep.subr.mxu0 0.0
        %473 = vmatpush2.msra.mxu0 %v436
        %474 = vmatprep.subr.mxu0 0.0
        %475 = vmatpush2.msra.mxu0 %v435
        %476 = vmatprep.subr.mxu0 0.0
        %477 = vmatpush2.msra.mxu0 %v434
        %478 = vmatprep.subr.mxu0 0.0
        %479 = vmatpush2.msra.mxu0 %v433
        %480 = vmatprep.subr.mxu0 0.0
        %481 = vmatpush2.msra.mxu0 %v432
        %482 = vmatprep.subr.mxu0 0.0
        %483 = vmatpush2.msra.mxu0 %v431
        %484 = vmatprep.subr.mxu0 0.0
        %485 = vmatpush2.msra.mxu0 %v430
        %486 = vmatprep.subr.mxu0 0.0
        %487 = vmatpush2.msra.mxu0 %v429
        %488 = vmatprep.subr.mxu0 0.0
        %489 = vmatpush2.msra.mxu0 %v428
        %490 = vmatprep.subr.mxu0 0.0
        %491 = vmatpush2.msra.mxu0 %v427
        %492 = vmatprep.subr.mxu0 0.0
        %493 = vmatpush2.msra.mxu0 %v426
        %494 = vmatprep.subr.mxu0 0.0
        %495 = vmatpush2.msra.mxu0 %v425
        %496 = vmatprep.subr.mxu0 0.0
        %497 = vmatpush2.msra.mxu0 %v424
        %498 = vmatprep.subr.mxu0 0.0
        %499 = vmatpush2.msra.mxu0 %v423
        %500 = vmatprep.subr.mxu0 0.0
        %501 = vmatpush2.msra.mxu0 %v422
        %502 = vmatprep.mubr.f32.mxu0 %v352
        %503 = vmatmul.mubr.f32.gmra.mxu0 %v351
        %v504 = vpop.f32.mrf.mxu0
        %v505 = vadd.f32 0.0, %v504
        %v506 = vpop.f32.mrf.mxu0
        %507 = vmatprep.mubr.f32.mxu0 %v354
        %508 = vmatmul.mubr.f32.gmra.mxu0 %v353
        %v509 = vpop.f32.mrf.mxu0
        %v510 = vadd.f32 0.0, %v509
        %v511 = vpop.f32.mrf.mxu0
        %512 = vmatprep.mubr.f32.mxu0 %v356
        %513 = vmatmul.mubr.f32.gmra.mxu0 %v355
        %v514 = vpop.f32.mrf.mxu0
        %v515 = vadd.f32 0.0, %v514
        %v516 = vpop.f32.mrf.mxu0
        %517 = vmatprep.mubr.f32.mxu0 %v358
        %518 = vmatmul.mubr.f32.gmra.mxu0 %v357
        %v519 = vpop.f32.mrf.mxu0
        %v520 = vadd.f32 0.0, %v519
        %v521 = vpop.f32.mrf.mxu0
        %522 = vmatprep.mubr.f32.mxu0 %v360
        %523 = vmatmul.mubr.f32.gmra.mxu0 %v359
        %v524 = vpop.f32.mrf.mxu0
        %v525 = vadd.f32 0.0, %v524
        %v526 = vpop.f32.mrf.mxu0
        %527 = vmatprep.mubr.f32.mxu0 %v362
        %528 = vmatmul.mubr.f32.gmra.mxu0 %v361
        %v529 = vpop.f32.mrf.mxu0
        %v530 = vadd.f32 0.0, %v529
        %v531 = vpop.f32.mrf.mxu0
        %532 = vmatprep.mubr.f32.mxu0 %v364
        %533 = vmatmul.mubr.f32.gmra.mxu0 %v363
        %v534 = vpop.f32.mrf.mxu0
        %v535 = vadd.f32 0.0, %v534
        %v536 = vpop.f32.mrf.mxu0
        %537 = vmatprep.mubr.f32.mxu0 %v366
        %538 = vmatmul.mubr.f32.gmra.mxu0 %v365
        %v539 = vpop.f32.mrf.mxu0
        %v540 = vadd.f32 0.0, %v539
        %v541 = vpop.f32.mrf.mxu0
        %542 = vmatprep.mubr.f32.mxu0 %v368
        %543 = vmatmul.mubr.f32.gmra.mxu0 %v367
        %v544 = vpop.f32.mrf.mxu0
        %v545 = vadd.f32 0.0, %v544
        %v546 = vpop.f32.mrf.mxu0
        %547 = vmatprep.mubr.f32.mxu0 %v370
        %548 = vmatmul.mubr.f32.gmra.mxu0 %v369
        %v549 = vpop.f32.mrf.mxu0
        %v550 = vadd.f32 0.0, %v549
        %v551 = vpop.f32.mrf.mxu0
        %552 = vmatprep.mubr.f32.mxu0 %v372
        %553 = vmatmul.mubr.f32.gmra.mxu0 %v371
        %v554 = vpop.f32.mrf.mxu0
        %v555 = vadd.f32 0.0, %v554
        %v556 = vpop.f32.mrf.mxu0
        %557 = vmatprep.mubr.f32.mxu0 %v374
        %558 = vmatmul.mubr.f32.gmra.mxu0 %v373
        %v559 = vpop.f32.mrf.mxu0
        %v560 = vadd.f32 0.0, %v559
        %v561 = vpop.f32.mrf.mxu0
        %562 = vmatprep.mubr.f32.mxu0 %v376
        %563 = vmatmul.mubr.f32.gmra.mxu0 %v375
        %v564 = vpop.f32.mrf.mxu0
        %v565 = vadd.f32 0.0, %v564
        %v566 = vpop.f32.mrf.mxu0
        %567 = vdwg.mxu0
        %568 = vmatprep.subr.mxu0 0.0
        %569 = vmatpush1.msra.mxu0 %v405
        %570 = vmatprep.subr.mxu0 0.0
        %571 = vmatpush1.msra.mxu0 %v404
        %572 = vmatprep.subr.mxu0 0.0
        %573 = vmatpush1.msra.mxu0 %v403
        %574 = vmatprep.subr.mxu0 0.0
        %575 = vmatpush1.msra.mxu0 %v402
        %576 = vmatprep.subr.mxu0 0.0
        %577 = vmatpush1.msra.mxu0 %v401
        %578 = vmatprep.subr.mxu0 0.0
        %579 = vmatpush1.msra.mxu0 %v400
        %580 = vmatprep.subr.mxu0 0.0
        %581 = vmatpush1.msra.mxu0 %v399
        %582 = vmatprep.subr.mxu0 0.0
        %583 = vmatpush1.msra.mxu0 %v398
        %584 = vmatprep.subr.mxu0 0.0
        %585 = vmatpush1.msra.mxu0 %v397
        %586 = vmatprep.subr.mxu0 0.0
        %587 = vmatpush1.msra.mxu0 %v396
        %588 = vmatprep.subr.mxu0 0.0
        %589 = vmatpush1.msra.mxu0 %v395
        %590 = vmatprep.subr.mxu0 0.0
        %591 = vmatpush1.msra.mxu0 %v394
        %592 = vmatprep.subr.mxu0 0.0
        %593 = vmatpush1.msra.mxu0 %v393
        %594 = vmatprep.subr.mxu0 0.0
        %595 = vmatpush1.msra.mxu0 %v392
        %596 = vmatprep.subr.mxu0 0.0
        %597 = vmatpush1.msra.mxu0 %v391
        %598 = vmatprep.subr.mxu0 0.0
        %599 = vmatpush1.msra.mxu0 %v390
        %600 = vmatprep.subr.mxu0 0.0
        %601 = vmatpush2.msra.mxu0 0.0
        %602 = vmatprep.subr.mxu0 0.0
        %603 = vmatpush2.msra.mxu0 0.0
        %604 = vmatprep.subr.mxu0 0.0
        %605 = vmatpush2.msra.mxu0 0.0
        %606 = vmatprep.subr.mxu0 0.0
        %607 = vmatpush2.msra.mxu0 0.0
        %608 = vmatprep.subr.mxu0 0.0
        %609 = vmatpush2.msra.mxu0 0.0
        %610 = vmatprep.subr.mxu0 0.0
        %611 = vmatpush2.msra.mxu0 0.0
        %612 = vmatprep.subr.mxu0 0.0
        %613 = vmatpush2.msra.mxu0 0.0
        %614 = vmatprep.subr.mxu0 0.0
        %615 = vmatpush2.msra.mxu0 0.0
        %616 = vmatprep.subr.mxu0 0.0
        %617 = vmatpush2.msra.mxu0 0.0
        %618 = vmatprep.subr.mxu0 0.0
        %619 = vmatpush2.msra.mxu0 0.0
        %620 = vmatprep.subr.mxu0 0.0
        %621 = vmatpush2.msra.mxu0 0.0
        %622 = vmatprep.subr.mxu0 0.0
        %623 = vmatpush2.msra.mxu0 0.0
        %624 = vmatprep.subr.mxu0 0.0
        %625 = vmatpush2.msra.mxu0 0.0
        %626 = vmatprep.subr.mxu0 0.0
        %627 = vmatpush2.msra.mxu0 0.0
        %628 = vmatprep.subr.mxu0 0.0
        %629 = vmatpush2.msra.mxu0 0.0
        %630 = vmatprep.subr.mxu0 0.0
        %631 = vmatpush2.msra.mxu0 0.0
        %632 = vmatprep.mubr.f32.mxu0 0.0
        %633 = vmatmul.mubr.f32.gmra.mxu0 %v377
        %v634 = vpop.f32.mrf.mxu0
        %v635 = vadd.f32 %v505, %v634
        %v636 = vpop.f32.mrf.mxu0
        %637 = vmatprep.mubr.f32.mxu0 0.0
        %638 = vmatmul.mubr.f32.gmra.mxu0 %v378
        %v639 = vpop.f32.mrf.mxu0
        %v640 = vadd.f32 %v510, %v639
        %v641 = vpop.f32.mrf.mxu0
        %642 = vmatprep.mubr.f32.mxu0 0.0
        %643 = vmatmul.mubr.f32.gmra.mxu0 %v379
        %v644 = vpop.f32.mrf.mxu0
        %v645 = vadd.f32 %v515, %v644
        %v646 = vpop.f32.mrf.mxu0
        %647 = vmatprep.mubr.f32.mxu0 0.0
        %648 = vmatmul.mubr.f32.gmra.mxu0 %v380
        %v649 = vpop.f32.mrf.mxu0
        %v650 = vadd.f32 %v520, %v649
        %v651 = vpop.f32.mrf.mxu0
        %652 = vmatprep.mubr.f32.mxu0 0.0
        %653 = vmatmul.mubr.f32.gmra.mxu0 %v381
        %v654 = vpop.f32.mrf.mxu0
        %v655 = vadd.f32 %v525, %v654
        %v656 = vpop.f32.mrf.mxu0
        %657 = vmatprep.mubr.f32.mxu0 0.0
        %658 = vmatmul.mubr.f32.gmra.mxu0 %v382
        %v659 = vpop.f32.mrf.mxu0
        %v660 = vadd.f32 %v530, %v659
        %v661 = vpop.f32.mrf.mxu0
        %662 = vmatprep.mubr.f32.mxu0 0.0
        %663 = vmatmul.mubr.f32.gmra.mxu0 %v383
        %v664 = vpop.f32.mrf.mxu0
        %v665 = vadd.f32 %v535, %v664
        %v666 = vpop.f32.mrf.mxu0
        %667 = vmatprep.mubr.f32.mxu0 0.0
        %668 = vmatmul.mubr.f32.gmra.mxu0 %v384
        %v669 = vpop.f32.mrf.mxu0
        %v670 = vadd.f32 %v540, %v669
        %v671 = vpop.f32.mrf.mxu0
        %672 = vmatprep.mubr.f32.mxu0 0.0
        %673 = vmatmul.mubr.f32.gmra.mxu0 %v385
        %v674 = vpop.f32.mrf.mxu0
        %v675 = vadd.f32 %v545, %v674
        %v676 = vpop.f32.mrf.mxu0
        %677 = vmatprep.mubr.f32.mxu0 0.0
        %678 = vmatmul.mubr.f32.gmra.mxu0 %v386
        %v679 = vpop.f32.mrf.mxu0
        %v680 = vadd.f32 %v550, %v679
        %v681 = vpop.f32.mrf.mxu0
        %682 = vmatprep.mubr.f32.mxu0 0.0
        %683 = vmatmul.mubr.f32.gmra.mxu0 %v387
        %v684 = vpop.f32.mrf.mxu0
        %v685 = vadd.f32 %v555, %v684
        %v686 = vpop.f32.mrf.mxu0
        %687 = vmatprep.mubr.f32.mxu0 0.0
        %688 = vmatmul.mubr.f32.gmra.mxu0 %v388
        %v689 = vpop.f32.mrf.mxu0
        %v690 = vadd.f32 %v560, %v689
        %v691 = vpop.f32.mrf.mxu0
        %692 = vmatprep.mubr.f32.mxu0 0.0
        %693 = vmatmul.mubr.f32.gmra.mxu0 %v389
        %v694 = vpop.f32.mrf.mxu0
        %v695 = vadd.f32 %v565, %v694
        %v696 = vpop.f32.mrf.mxu0
        %697 = vdwg.mxu0
        %v698 = vld [vmem:[%s4] sm:$0x1]
        %v700 = vlaneseq
        %v701 = vshrl.u32 %v700, 7
        %v702 = vsub.s32 0, %v701
        %v703 = vrot.slane %v698, %v702
        %v705 = vadd.f32 %v635, %v703
        %v706 = vadd.f32 %v640, %v703
        %v707 = vadd.f32 %v645, %v703
        %v708 = vadd.f32 %v650, %v703
        %v709 = vadd.f32 %v655, %v703
        %v710 = vadd.f32 %v660, %v703
        %v711 = vadd.f32 %v665, %v703
        %v712 = vadd.f32 %v670, %v703
        %v713 = vadd.f32 %v675, %v703
        %v714 = vadd.f32 %v680, %v703
        %v715 = vadd.f32 %v685, %v703
        %v716 = vadd.f32 %v690, %v703
        %v717 = vadd.f32 %v695, %v703
        %v718 = vld [vmem:[%s5] sm:$0xff]
        %v719 = vld [vmem:[%s5 + $0x8] sm:$0xff]
        %v720 = vld [vmem:[%s5 + $0x10] sm:$0xff]
        %v721 = vld [vmem:[%s5 + $0x18] sm:$0xff]
        %v722 = vld [vmem:[%s5 + $0x20] sm:$0xff]
        %v723 = vld [vmem:[%s5 + $0x28] sm:$0xff]
        %v724 = vld [vmem:[%s5 + $0x30] sm:$0xff]
        %v725 = vld [vmem:[%s5 + $0x38] sm:$0xff]
        %v726 = vld [vmem:[%s5 + $0x40] sm:$0xff]
        %v727 = vld [vmem:[%s5 + $0x48] sm:$0xff]
        %v728 = vld [vmem:[%s5 + $0x50] sm:$0xff]
        %v729 = vld [vmem:[%s5 + $0x58] sm:$0xff]
        %v730 = vld [vmem:[%s5 + $0x60] sm:$0xff]
        %v731 = vld [vmem:[%s5 + $0x68] sm:$0xff]
        %v732 = vld [vmem:[%s5 + $0x70] sm:$0xff]
        %v733 = vld [vmem:[%s5 + $0x78] sm:$0xff]
        %v734 = vld [vmem:[%s5 + $0x80] sm:$0xff]
        %v735 = vld [vmem:[%s5 + $0x88] sm:$0xff]
        %v736 = vld [vmem:[%s5 + $0x90] sm:$0xff]
        %v737 = vld [vmem:[%s5 + $0x98] sm:$0xff]
        %v738 = vld [vmem:[%s5 + $0xa0] sm:$0xff]
        %v739 = vld [vmem:[%s5 + $0xa8] sm:$0xff]
        %v740 = vld [vmem:[%s5 + $0xb0] sm:$0xff]
        %v741 = vld [vmem:[%s5 + $0xb8] sm:$0xff]
        %v742 = vld [vmem:[%s5 + $0xc0] sm:$0xff]
        %v743 = vld [vmem:[%s5 + $0xc8] sm:$0xff]
        %v744 = vld [vmem:[%s5 + $0xd0] sm:$0xff]
        %v745 = vld [vmem:[%s5 + $0xd8] sm:$0xff]
        %v746 = vld [vmem:[%s5 + $0xe0] sm:$0xff]
        %v747 = vld [vmem:[%s5 + $0xe8] sm:$0xff]
        %v748 = vld [vmem:[%s5 + $0xf0] sm:$0xff]
        %v749 = vld [vmem:[%s5 + $0xf8] sm:$0xff]
        %v750 = vld [vmem:[%s6] sm:$0x3]
        %v752 = vlaneseq
        %v753 = vshrl.u32 %v752, 7
        %v754 = vsub.s32 0, %v753
        %v755 = vrot.slane %v750, %v754
        %v756 = vlaneseq
        %v757 = vshrl.u32 %v756, 7
        %v758 = vsub.s32 1, %v757
        %v759 = vrot.slane %v750, %v758
        %762 = vmatprep.subr.mxu0 %v749
        %763 = vmatpush1.msra.mxu0 %v748
        %764 = vmatprep.subr.mxu0 %v747
        %765 = vmatpush1.msra.mxu0 %v746
        %766 = vmatprep.subr.mxu0 %v745
        %767 = vmatpush1.msra.mxu0 %v744
        %768 = vmatprep.subr.mxu0 %v743
        %769 = vmatpush1.msra.mxu0 %v742
        %770 = vmatprep.subr.mxu0 %v741
        %771 = vmatpush1.msra.mxu0 %v740
        %772 = vmatprep.subr.mxu0 %v739
        %773 = vmatpush1.msra.mxu0 %v738
        %774 = vmatprep.subr.mxu0 %v737
        %775 = vmatpush1.msra.mxu0 %v736
        %776 = vmatprep.subr.mxu0 %v735
        %777 = vmatpush1.msra.mxu0 %v734
        %778 = vmatprep.subr.mxu0 %v733
        %779 = vmatpush1.msra.mxu0 %v732
        %780 = vmatprep.subr.mxu0 %v731
        %781 = vmatpush1.msra.mxu0 %v730
        %782 = vmatprep.subr.mxu0 %v729
        %783 = vmatpush1.msra.mxu0 %v728
        %784 = vmatprep.subr.mxu0 %v727
        %785 = vmatpush1.msra.mxu0 %v726
        %786 = vmatprep.subr.mxu0 %v725
        %787 = vmatpush1.msra.mxu0 %v724
        %788 = vmatprep.subr.mxu0 %v723
        %789 = vmatpush1.msra.mxu0 %v722
        %790 = vmatprep.subr.mxu0 %v721
        %791 = vmatpush1.msra.mxu0 %v720
        %792 = vmatprep.subr.mxu0 %v719
        %793 = vmatpush1.msra.mxu0 %v718
        %794 = vmatprep.subr.mxu0 0.0
        %795 = vmatpush2.msra.mxu0 0.0
        %796 = vmatprep.subr.mxu0 0.0
        %797 = vmatpush2.msra.mxu0 0.0
        %798 = vmatprep.subr.mxu0 0.0
        %799 = vmatpush2.msra.mxu0 0.0
        %800 = vmatprep.subr.mxu0 0.0
        %801 = vmatpush2.msra.mxu0 0.0
        %802 = vmatprep.subr.mxu0 0.0
        %803 = vmatpush2.msra.mxu0 0.0
        %804 = vmatprep.subr.mxu0 0.0
        %805 = vmatpush2.msra.mxu0 0.0
        %806 = vmatprep.subr.mxu0 0.0
        %807 = vmatpush2.msra.mxu0 0.0
        %808 = vmatprep.subr.mxu0 0.0
        %809 = vmatpush2.msra.mxu0 0.0
        %810 = vmatprep.subr.mxu0 0.0
        %811 = vmatpush2.msra.mxu0 0.0
        %812 = vmatprep.subr.mxu0 0.0
        %813 = vmatpush2.msra.mxu0 0.0
        %814 = vmatprep.subr.mxu0 0.0
        %815 = vmatpush2.msra.mxu0 0.0
        %816 = vmatprep.subr.mxu0 0.0
        %817 = vmatpush2.msra.mxu0 0.0
        %818 = vmatprep.subr.mxu0 0.0
        %819 = vmatpush2.msra.mxu0 0.0
        %820 = vmatprep.subr.mxu0 0.0
        %821 = vmatpush2.msra.mxu0 0.0
        %822 = vmatprep.subr.mxu0 0.0
        %823 = vmatpush2.msra.mxu0 0.0
        %824 = vmatprep.subr.mxu0 0.0
        %825 = vmatpush2.msra.mxu0 0.0
        %826 = vmatprep.mubr.f32.mxu0 0.0
        %827 = vmatmul.mubr.f32.gmra.mxu0 %v705
        %v828 = vpop.f32.mrf.mxu0
        %v829 = vadd.f32 %v755, %v828
        %v830 = vpop.f32.mrf.mxu0
        %v831 = vadd.f32 %v759, %v830
        %832 = vmatprep.mubr.f32.mxu0 0.0
        %833 = vmatmul.mubr.f32.gmra.mxu0 %v706
        %v834 = vpop.f32.mrf.mxu0
        %v835 = vadd.f32 %v755, %v834
        %v836 = vpop.f32.mrf.mxu0
        %v837 = vadd.f32 %v759, %v836
        %838 = vmatprep.mubr.f32.mxu0 0.0
        %839 = vmatmul.mubr.f32.gmra.mxu0 %v707
        %v840 = vpop.f32.mrf.mxu0
        %v841 = vadd.f32 %v755, %v840
        %v842 = vpop.f32.mrf.mxu0
        %v843 = vadd.f32 %v759, %v842
        %844 = vmatprep.mubr.f32.mxu0 0.0
        %845 = vmatmul.mubr.f32.gmra.mxu0 %v708
        %v846 = vpop.f32.mrf.mxu0
        %v847 = vadd.f32 %v755, %v846
        %v848 = vpop.f32.mrf.mxu0
        %v849 = vadd.f32 %v759, %v848
        %850 = vmatprep.mubr.f32.mxu0 0.0
        %851 = vmatmul.mubr.f32.gmra.mxu0 %v709
        %v852 = vpop.f32.mrf.mxu0
        %v853 = vadd.f32 %v755, %v852
        %v854 = vpop.f32.mrf.mxu0
        %v855 = vadd.f32 %v759, %v854
        %856 = vmatprep.mubr.f32.mxu0 0.0
        %857 = vmatmul.mubr.f32.gmra.mxu0 %v710
        %v858 = vpop.f32.mrf.mxu0
        %v859 = vadd.f32 %v755, %v858
        %v860 = vpop.f32.mrf.mxu0
        %v861 = vadd.f32 %v759, %v860
        %862 = vmatprep.mubr.f32.mxu0 0.0
        %863 = vmatmul.mubr.f32.gmra.mxu0 %v711
        %v864 = vpop.f32.mrf.mxu0
        %v865 = vadd.f32 %v755, %v864
        %v866 = vpop.f32.mrf.mxu0
        %v867 = vadd.f32 %v759, %v866
        %868 = vmatprep.mubr.f32.mxu0 0.0
        %869 = vmatmul.mubr.f32.gmra.mxu0 %v712
        %v870 = vpop.f32.mrf.mxu0
        %v871 = vadd.f32 %v755, %v870
        %v872 = vpop.f32.mrf.mxu0
        %v873 = vadd.f32 %v759, %v872
        %874 = vmatprep.mubr.f32.mxu0 0.0
        %875 = vmatmul.mubr.f32.gmra.mxu0 %v713
        %v876 = vpop.f32.mrf.mxu0
        %v877 = vadd.f32 %v755, %v876
        %v878 = vpop.f32.mrf.mxu0
        %v879 = vadd.f32 %v759, %v878
        %880 = vmatprep.mubr.f32.mxu0 0.0
        %881 = vmatmul.mubr.f32.gmra.mxu0 %v714
        %v882 = vpop.f32.mrf.mxu0
        %v883 = vadd.f32 %v755, %v882
        %v884 = vpop.f32.mrf.mxu0
        %v885 = vadd.f32 %v759, %v884
        %886 = vmatprep.mubr.f32.mxu0 0.0
        %887 = vmatmul.mubr.f32.gmra.mxu0 %v715
        %v888 = vpop.f32.mrf.mxu0
        %v889 = vadd.f32 %v755, %v888
        %v890 = vpop.f32.mrf.mxu0
        %v891 = vadd.f32 %v759, %v890
        %892 = vmatprep.mubr.f32.mxu0 0.0
        %893 = vmatmul.mubr.f32.gmra.mxu0 %v716
        %v894 = vpop.f32.mrf.mxu0
        %v895 = vadd.f32 %v755, %v894
        %v896 = vpop.f32.mrf.mxu0
        %v897 = vadd.f32 %v759, %v896
        %898 = vmatprep.mubr.f32.mxu0 0.0
        %899 = vmatmul.mubr.f32.gmra.mxu0 %v717
        %v900 = vpop.f32.mrf.mxu0
        %v901 = vadd.f32 %v755, %v900
        %v902 = vpop.f32.mrf.mxu0
        %v903 = vadd.f32 %v759, %v902
        %904 = vdwg.mxu0
        %v905 = vtanh.pop %v829
        %v906 = vtanh.pop %v831
        %v907 = vtanh.pop %v835
        %v908 = vtanh.pop %v837
        %v909 = vtanh.pop %v841
        %v910 = vtanh.pop %v843
        %v911 = vtanh.pop %v847
        %v912 = vtanh.pop %v849
        %v913 = vtanh.pop %v853
        %v914 = vtanh.pop %v855
        %v915 = vtanh.pop %v859
        %v916 = vtanh.pop %v861
        %v917 = vtanh.pop %v865
        %v918 = vtanh.pop %v867
        %v919 = vtanh.pop %v871
        %v920 = vtanh.pop %v873
        %v921 = vtanh.pop %v877
        %v922 = vtanh.pop %v879
        %v923 = vtanh.pop %v883
        %v924 = vtanh.pop %v885
        %v925 = vtanh.pop %v889
        %v926 = vtanh.pop %v891
        %v927 = vtanh.pop %v895
        %v928 = vtanh.pop %v897
        %v929 = vtanh.pop %v901
        %v930 = vtanh.pop %v903
        %v931 = vmul.f32 %v905, 4.0
        %v932 = vmul.f32 %v906, 4.0
        %v933 = vmul.f32 %v907, 4.0
        %v934 = vmul.f32 %v908, 4.0
        %v935 = vmul.f32 %v909, 4.0
        %v936 = vmul.f32 %v910, 4.0
        %v937 = vmul.f32 %v911, 4.0
        %v938 = vmul.f32 %v912, 4.0
        %v939 = vmul.f32 %v913, 4.0
        %v940 = vmul.f32 %v914, 4.0
        %v941 = vmul.f32 %v915, 4.0
        %v942 = vmul.f32 %v916, 4.0
        %v943 = vmul.f32 %v917, 4.0
        %v944 = vmul.f32 %v918, 4.0
        %v945 = vmul.f32 %v919, 4.0
        %v946 = vmul.f32 %v920, 4.0
        %v947 = vmul.f32 %v921, 4.0
        %v948 = vmul.f32 %v922, 4.0
        %v949 = vmul.f32 %v923, 4.0
        %v950 = vmul.f32 %v924, 4.0
        %v951 = vmul.f32 %v925, 4.0
        %v952 = vmul.f32 %v926, 4.0
        %v953 = vmul.f32 %v927, 4.0
        %v954 = vmul.f32 %v928, 4.0
        %v955 = vmul.f32 %v929, 4.0
        %v956 = vmul.f32 %v930, 4.0
        %v957 = vadd.f32 %v351, %v931
        %v958 = vadd.f32 %v352, %v932
        %v959 = vadd.f32 %v353, %v933
        %v960 = vadd.f32 %v354, %v934
        %v961 = vadd.f32 %v355, %v935
        %v962 = vadd.f32 %v356, %v936
        %v963 = vadd.f32 %v357, %v937
        %v964 = vadd.f32 %v358, %v938
        %v965 = vadd.f32 %v359, %v939
        %v966 = vadd.f32 %v360, %v940
        %v967 = vadd.f32 %v361, %v941
        %v968 = vadd.f32 %v362, %v942
        %v969 = vadd.f32 %v363, %v943
        %v970 = vadd.f32 %v364, %v944
        %v971 = vadd.f32 %v365, %v945
        %v972 = vadd.f32 %v366, %v946
        %v973 = vadd.f32 %v367, %v947
        %v974 = vadd.f32 %v368, %v948
        %v975 = vadd.f32 %v369, %v949
        %v976 = vadd.f32 %v370, %v950
        %v977 = vadd.f32 %v371, %v951
        %v978 = vadd.f32 %v372, %v952
        %v979 = vadd.f32 %v373, %v953
        %v980 = vadd.f32 %v374, %v954
        %v981 = vadd.f32 %v375, %v955
        %v982 = vadd.f32 %v376, %v956
        %983 = vst [vmem:[%s313] sm:$0xff] %v957
        %984 = vst [vmem:[%s313 + $0x8] sm:$0xff] %v958
        %985 = vst [vmem:[%s313 + $0x10] sm:$0xff] %v959
        %986 = vst [vmem:[%s313 + $0x18] sm:$0xff] %v960
        %987 = vst [vmem:[%s313 + $0x20] sm:$0xff] %v961
        %988 = vst [vmem:[%s313 + $0x28] sm:$0xff] %v962
        %989 = vst [vmem:[%s313 + $0x30] sm:$0xff] %v963
        %990 = vst [vmem:[%s313 + $0x38] sm:$0xff] %v964
        %991 = vst [vmem:[%s313 + $0x40] sm:$0xff] %v965
        %992 = vst [vmem:[%s313 + $0x48] sm:$0xff] %v966
        %993 = vst [vmem:[%s313 + $0x50] sm:$0xff] %v967
        %994 = vst [vmem:[%s313 + $0x58] sm:$0xff] %v968
        %995 = vst [vmem:[%s313 + $0x60] sm:$0xff] %v969
        %996 = vst [vmem:[%s313 + $0x68] sm:$0xff] %v970
        %997 = vst [vmem:[%s313 + $0x70] sm:$0xff] %v971
        %998 = vst [vmem:[%s313 + $0x78] sm:$0xff] %v972
        %999 = vst [vmem:[%s313 + $0x80] sm:$0xff] %v973
        %1000 = vst [vmem:[%s313 + $0x88] sm:$0xff] %v974
        %1001 = vst [vmem:[%s313 + $0x90] sm:$0xff] %v975
        %1002 = vst [vmem:[%s313 + $0x98] sm:$0xff] %v976
        %1003 = vst [vmem:[%s313 + $0xa0] sm:$0xff] %v977
        %1004 = vst [vmem:[%s313 + $0xa8] sm:$0xff] %v978
        %1005 = vst [vmem:[%s313 + $0xb0] sm:$0xff] %v979
        %1006 = vst [vmem:[%s313 + $0xb8] sm:$0xff] %v980
        %1007 = vst [vmem:[%s313 + $0xc0] sm:$0xff] %v981
        %1008 = vst [vmem:[%s313 + $0xc8] sm:$0xff] %v982
        %s1009 = sand.u32 %s183, 1
        %s1010 = sand.u32 %s183, 1
        %s1011 = smul.addr %s1010, 208
        %s1012 = scalar_lea.vmem [#allocation2], %s1011
        // Predicated region
        $region49: #{_gen16_forward_impl.1} parent=47 // pred_check
          %p1013 = pneg %p193
        $region50: #{_gen16_forward_impl.1} parent=47 // pred_check_branch
          %1015 = sbr.rel (%p1013) target = $region52
        $region51: #{_gen16_forward_impl.1} parent=47 // pred_region
          %s1016 = smul.u32 13, %s18
          %s1017 = ssub.s32 25, %s1016
          %p1018 = scmp.lt.s32.totalorder %s1017, 13
          %s1019 = scalar_select %p1018, %s1017, 13
          %s1020 = smul.u32 128, %s1019
          %s1021 = smul.u32 %s1020, 2
          %p1022 = scmp.ne.s32.totalorder 0, %s1021
          %s1023 = smul.addr %s1016, 2
          %s1024 = smul.addr %s1023, 8
          %s1025 = scalar_lea.vmem %s7, %s1024
          // Predicated region
          $region53: #{_gen16_forward_impl.1} parent=51 // pred_check
            %p1026 = pneg %p1022
          $region54: #{_gen16_forward_impl.1} parent=51 // pred_check_branch
            %1028 = sbr.rel (%p1026) target = $region56
          $region55: #{_gen16_forward_impl.1} parent=51 // pred_region
            // Predicated region
            $region57: #{_gen16_forward_impl.1} parent=55 // pred_check
              _
            $region58: #{_gen16_forward_impl.1} parent=55 // pred_check_branch
              %1030 = sbr.rel (0) target = $region60
            $region59: #{_gen16_forward_impl.1} parent=55 // pred_region
              %s1031 = sdiv.u32.pop %s1019, 13
              %s1032 = srem.u32.pop %s1019, 13
              // While loop
              $region61: #{_gen16_forward_impl.1} parent=59 // loop_pre_header
                _
              $region62: #{_gen16_forward_impl.1} parent=59 // loop_header
                %s1034 = sphi 0, %s1036
                %p1035 = scmp.ge.s32.totalorder %s1034, %s1031
                %s1039 = sphi 0, %s1096
                %s1040 = sphi %s1012, %s1099
                %s1041 = sphi %s1025, %s1100
              $region63: #{_gen16_forward_impl.1} parent=59 // loop_header_branch
                %1038 = sbr.rel (%p1035) target = $region67
              $region64: #{_gen16_forward_impl.1} parent=59 // loop_body
                %v1042 = vld [vmem:[%s1040] sm:$0xff]
                %1043 = vst [vmem:[%s1041] sm:$0xff] %v1042
                %v1044 = vld [vmem:[%s1040 + $0x10] sm:$0xff]
                %1045 = vst [vmem:[%s1041 + $0x10] sm:$0xff] %v1044
                %v1046 = vld [vmem:[%s1040 + $0x20] sm:$0xff]
                %1047 = vst [vmem:[%s1041 + $0x20] sm:$0xff] %v1046
                %v1048 = vld [vmem:[%s1040 + $0x30] sm:$0xff]
                %1049 = vst [vmem:[%s1041 + $0x30] sm:$0xff] %v1048
                %v1050 = vld [vmem:[%s1040 + $0x40] sm:$0xff]
                %1051 = vst [vmem:[%s1041 + $0x40] sm:$0xff] %v1050
                %v1052 = vld [vmem:[%s1040 + $0x50] sm:$0xff]
                %1053 = vst [vmem:[%s1041 + $0x50] sm:$0xff] %v1052
                %v1054 = vld [vmem:[%s1040 + $0x60] sm:$0xff]
                %1055 = vst [vmem:[%s1041 + $0x60] sm:$0xff] %v1054
                %v1056 = vld [vmem:[%s1040 + $0x70] sm:$0xff]
                %1057 = vst [vmem:[%s1041 + $0x70] sm:$0xff] %v1056
                %v1058 = vld [vmem:[%s1040 + $0x80] sm:$0xff]
                %1059 = vst [vmem:[%s1041 + $0x80] sm:$0xff] %v1058
                %v1060 = vld [vmem:[%s1040 + $0x90] sm:$0xff]
                %1061 = vst [vmem:[%s1041 + $0x90] sm:$0xff] %v1060
                %v1062 = vld [vmem:[%s1040 + $0xa0] sm:$0xff]
                %1063 = vst [vmem:[%s1041 + $0xa0] sm:$0xff] %v1062
                %v1064 = vld [vmem:[%s1040 + $0xb0] sm:$0xff]
                %1065 = vst [vmem:[%s1041 + $0xb0] sm:$0xff] %v1064
                %v1066 = vld [vmem:[%s1040 + $0xc0] sm:$0xff]
                %1067 = vst [vmem:[%s1041 + $0xc0] sm:$0xff] %v1066
                %v1068 = vld [vmem:[%s1040 + $0x8] sm:$0xff]
                %1069 = vst [vmem:[%s1041 + $0x8] sm:$0xff] %v1068
                %v1070 = vld [vmem:[%s1040 + $0x18] sm:$0xff]
                %1071 = vst [vmem:[%s1041 + $0x18] sm:$0xff] %v1070
                %v1072 = vld [vmem:[%s1040 + $0x28] sm:$0xff]
                %1073 = vst [vmem:[%s1041 + $0x28] sm:$0xff] %v1072
                %v1074 = vld [vmem:[%s1040 + $0x38] sm:$0xff]
                %1075 = vst [vmem:[%s1041 + $0x38] sm:$0xff] %v1074
                %v1076 = vld [vmem:[%s1040 + $0x48] sm:$0xff]
                %1077 = vst [vmem:[%s1041 + $0x48] sm:$0xff] %v1076
                %v1078 = vld [vmem:[%s1040 + $0x58] sm:$0xff]
                %1079 = vst [vmem:[%s1041 + $0x58] sm:$0xff] %v1078
                %v1080 = vld [vmem:[%s1040 + $0x68] sm:$0xff]
                %1081 = vst [vmem:[%s1041 + $0x68] sm:$0xff] %v1080
                %v1082 = vld [vmem:[%s1040 + $0x78] sm:$0xff]
                %1083 = vst [vmem:[%s1041 + $0x78] sm:$0xff] %v1082
                %v1084 = vld [vmem:[%s1040 + $0x88] sm:$0xff]
                %1085 = vst [vmem:[%s1041 + $0x88] sm:$0xff] %v1084
                %v1086 = vld [vmem:[%s1040 + $0x98] sm:$0xff]
                %1087 = vst [vmem:[%s1041 + $0x98] sm:$0xff] %v1086
                %v1088 = vld [vmem:[%s1040 + $0xa8] sm:$0xff]
                %1089 = vst [vmem:[%s1041 + $0xa8] sm:$0xff] %v1088
                %v1090 = vld [vmem:[%s1040 + $0xb8] sm:$0xff]
                %1091 = vst [vmem:[%s1041 + $0xb8] sm:$0xff] %v1090
                %v1092 = vld [vmem:[%s1040 + $0xc8] sm:$0xff]
                %1093 = vst [vmem:[%s1041 + $0xc8] sm:$0xff] %v1092
                %s1094 = sadd.s32 1, %s1039
                %p1095 = scmp.ge.s32.totalorder %s1094, %s1031
                %s1096 = scalar_select %p1095, 0, %s1094
                %s1097 = smul.u32 %s1096, 208
                %s1098 = smul.u32 %s1096, 208
                %s1099 = scalar_lea.vmem %s1012, %s1097 [#allocation2]
                %s1100 = scalar_lea.vmem %s1025, %s1098
              $region65: #{_gen16_forward_impl.1} parent=59 // loop_footer
                %s1036 = sadd.s32 %s1034, 1
              $region66: #{_gen16_forward_impl.1} parent=59 // loop_footer_branch
                %1033 = sbr.rel target = $region62
              $region67: #{_gen16_forward_impl.1} parent=59 // loop_exit
                _
              %s1101 = sdiv.u32.pop %s1019, 13
              %s1102 = srem.u32.pop %s1019, 13
              %s1103 = smul.u32 %s1101, 13
              %s1104 = smul.u32 16, %s1103
              %s1105 = scalar_lea.vmem %s1012, %s1104 [#allocation2]
              %s1106 = smul.u32 16, %s1103
              %s1107 = scalar_lea.vmem %s1025, %s1106
              // While loop
              $region68: #{_gen16_forward_impl.1} parent=59 // loop_pre_header
                _
              $region69: #{_gen16_forward_impl.1} parent=59 // loop_header
                %s1109 = sphi 0, %s1111
                %p1110 = scmp.ge.s32.totalorder %s1109, %s1102
                %s1114 = sphi 0, %s1123
                %s1115 = sphi %s1105, %s1126
                %s1116 = sphi %s1107, %s1127
              $region70: #{_gen16_forward_impl.1} parent=59 // loop_header_branch
                %1113 = sbr.rel (%p1110) target = $region74
              $region71: #{_gen16_forward_impl.1} parent=59 // loop_body
                %v1117 = vld [vmem:[%s1115] sm:$0xff]
                %1118 = vst [vmem:[%s1116] sm:$0xff] %v1117
                %v1119 = vld [vmem:[%s1115 + $0x8] sm:$0xff]
                %1120 = vst [vmem:[%s1116 + $0x8] sm:$0xff] %v1119
                %s1121 = sadd.s32 1, %s1114
                %p1122 = scmp.ge.s32.totalorder %s1121, %s1102
                %s1123 = scalar_select %p1122, 0, %s1121
                %s1124 = smul.u32 %s1123, 16
                %s1125 = smul.u32 %s1123, 16
                %s1126 = scalar_lea.vmem %s1105, %s1124 [#allocation2]
                %s1127 = scalar_lea.vmem %s1107, %s1125
              $region72: #{_gen16_forward_impl.1} parent=59 // loop_footer
                %s1111 = sadd.s32 %s1109, 1
              $region73: #{_gen16_forward_impl.1} parent=59 // loop_footer_branch
                %1108 = sbr.rel target = $region69
              $region74: #{_gen16_forward_impl.1} parent=59 // loop_exit
                _
            $region60: #{_gen16_forward_impl.1} parent=55 // pred_fallthru
              _
            // Predicated region
            $region75: #{_gen16_forward_impl.1} parent=55 // pred_check
              _
            $region76: #{_gen16_forward_impl.1} parent=55 // pred_check_branch
              %1129 = sbr.rel target = $region78
            $region77: #{_gen16_forward_impl.1} parent=55 // pred_region
              _
            $region78: #{_gen16_forward_impl.1} parent=55 // pred_fallthru
              _
          $region56: #{_gen16_forward_impl.1} parent=51 // pred_fallthru
            _
          %1130 = vnop
        $region52: #{_gen16_forward_impl.1} parent=47 // pred_fallthru
          _
      $region48: #{_gen16_forward_impl.1} parent=5 // pred_fallthru
        _
      %p1131 = scmp.le.s32.totalorder 2, %s13
      // Predicated region
      $region79: #{_gen16_forward_impl.1} parent=5 // pred_check
        %p1132 = pneg %p1131
      $region80: #{_gen16_forward_impl.1} parent=5 // pred_check_branch
        %1134 = sbr.rel (%p1132) target = $region82
      $region81: #{_gen16_forward_impl.1} parent=5 // pred_region
        %s1135 = ssub.s32 %s13, 2
        // Predicated region
        $region83: #{_gen16_forward_impl.1} parent=81 // pred_check
          %p1136 = pneg %p199
        $region84: #{_gen16_forward_impl.1} parent=81 // pred_check_branch
          %1138 = sbr.rel (%p1136) target = $region86
        $region85: #{_gen16_forward_impl.1} parent=81 // pred_region
          %s1139 = sand.u32 %s184, 1
          %s1140 = sand.u32 %s184, 1
          %s1141 = smul.addr %s1140, 208
          %s1142 = scalar_lea.vmem [#allocation2], %s1141
        $region86: #{_gen16_forward_impl.1} parent=81 // pred_fallthru
          _
      $region82: #{_gen16_forward_impl.1} parent=5 // pred_fallthru
        _
    $region6: #{_gen16_forward_impl.1} parent=1 // loop_footer
      %s17 = sadd.s32 1, %s13
    $region7: #{_gen16_forward_impl.1} parent=1 // loop_footer_branch
      %12 = sbr.rel target = $region3
    $region8: #{_gen16_forward_impl.1} parent=1 // loop_exit
      _

// kernel: _gen16_forward_impl.1
$region0: #{_gen16_forward_impl.1}
  #allocation0 [shape = 'u32[]', space=smem, size = 0x4, offset = 0x4, fixed_abs, tag = 'smem constant byte address 0x4 - core index']
  #allocation1 [shape = 'u32[144,128]{1,0:T(1,128)}', space=vmem, size = 0x12000, scoped, tag = 'internal scratch']
  %s0 = inlined_call_operand.vmem [shape: f32[200,128], index: 0, kind: input, shape index: {}]
  %s1 = inlined_call_operand.vmem [shape: f32[200,256], index: 1, kind: input, shape index: {}, may-alias: {1,7}]
  %s2 = inlined_call_operand.vmem [shape: f32[128,128], index: 2, kind: input, shape index: {}]
  %s3 = inlined_call_operand.vmem [shape: f32[256,128], index: 3, kind: input, shape index: {}]
  %s4 = inlined_call_operand.vmem [shape: f32[1,128], index: 4, kind: input, shape index: {}]
  %s5 = inlined_call_operand.vmem [shape: f32[128,256], index: 5, kind: input, shape index: {}]
  %s6 = inlined_call_operand.vmem [shape: f32[1,256], index: 6, kind: input, shape index: {}]
  %s7 = inlined_call_operand.vmem [shape: f32[200,256], index: 7, kind: output, shape index: {}, may-alias: {1,7}]
  %s8 = sld [smem:[#allocation0]]
  $region87: #{_gen16_forward_impl.1} parent=0
    _
  %s10 = ssub.s32 1, %s8
  %s11 = scalar_select 0, %s10, %s8
  $region1: #{_gen16_forward_impl.1} parent=0
    #allocation2 [shape = 'u8[212992]{0}', space=vmem, size = 0x34000, scoped, tag = 'output window, operand 0']
    loop: start=0, step=1, limit=4
    $region2: #{_gen16_forward_impl.1} parent=1 // loop_pre_header
      _
    $region3: #{_gen16_forward_impl.1} parent=1 // loop_header
      %s13 = sphi 0, %s17
      %p14 = scmp.ge.s32.totalorder %s13, 4
      %s23 = sphi 0, %s25
      %s26 = sphi 0, %s23
      %s27 = sphi 0, %s26
      %s43 = sphi 0, %s27
      %s49 = sphi 0, %s51
      %s52 = sphi 0, %s49
      %s53 = sphi 0, %s52
      %s69 = sphi 0, %s53
      %s73 = sphi 0, %s73
      %s75 = sphi 0, %s73
      %s76 = sphi 0, %s75
      %s90 = sphi 0, %s76
      %s94 = sphi 0, %s94
      %s96 = sphi 0, %s94
      %s97 = sphi 0, %s96
      %s111 = sphi 0, %s97
      %s115 = sphi 0, %s115
      %s117 = sphi 0, %s115
      %s118 = sphi 0, %s117
      %s132 = sphi 0, %s118
      %s136 = sphi 0, %s136
      %s138 = sphi 0, %s136
      %s139 = sphi 0, %s138
      %s153 = sphi 0, %s139
      %s157 = sphi 0, %s157
      %s159 = sphi 0, %s157
      %s160 = sphi 0, %s159
      %s174 = sphi 0, %s160
      %s180 = sphi 0, %s182
      %s183 = sphi 0, %s180
      %s184 = sphi 0, %s183
      %s200 = sphi 0, %s184
    $region4: #{_gen16_forward_impl.1} parent=1 // loop_header_branch
      %16 = sbr.rel (%p14) target = $region8
    $region5: #{_gen16_forward_impl.1} parent=1 // loop_body
      %s18 = ssub.s32 %s13, 1
      %s19 = ssub.s32 %s13, 2
      %s20 = sadd.s32 %s13, 1
      %s21 = ssub.s32 %s13, %s20
      %p22 = scmp.eq.s32.totalorder %s21, 0
      %s24 = sadd.s32 %s23, 1
      %s25 = scalar_select %p22, %s23, %s24
      %p28 = pneg %p22
      %p29 = scmp.eq.s32.totalorder %s13, 1
      %p30 = por %p28, %p29
      %p31 = scmp.ne.s32.totalorder %s23, %s26
      %p32 = scmp.eq.s32.totalorder %s13, 0
      %p33 = por %p31, %p32
      %p34 = scmp.ne.s32.totalorder %s23, %s26
      %p35 = scmp.eq.s32.totalorder %s18, 1
      %p36 = por %p34, %p35
      %p37 = scmp.ne.s32.totalorder %s26, %s27
      %p38 = scmp.eq.s32.totalorder %s18, 0
      %p39 = por %p37, %p38
      %p40 = scmp.ne.s32.totalorder %s26, %s27
      %p41 = scmp.eq.s32.totalorder %s19, 1
      %p42 = por %p40, %p41
      %p44 = scmp.ne.s32.totalorder %s27, %s43
      %p45 = scmp.eq.s32.totalorder %s19, 0
      %p46 = por %p44, %p45
      %s47 = ssub.s32 %s13, %s20
      %p48 = scmp.eq.s32.totalorder %s47, 0
      %s50 = sadd.s32 %s49, 1
      %s51 = scalar_select %p48, %s49, %s50
      %p54 = pneg %p48
      %p55 = scmp.eq.s32.totalorder %s13, 1
      %p56 = por %p54, %p55
      %p57 = scmp.ne.s32.totalorder %s49, %s52
      %p58 = scmp.eq.s32.totalorder %s13, 0
      %p59 = por %p57, %p58
      %p60 = scmp.ne.s32.totalorder %s49, %s52
      %p61 = scmp.eq.s32.totalorder %s18, 1
      %p62 = por %p60, %p61
      %p63 = scmp.ne.s32.totalorder %s52, %s53
      %p64 = scmp.eq.s32.totalorder %s18, 0
      %p65 = por %p63, %p64
      %p66 = scmp.ne.s32.totalorder %s52, %s53
      %p67 = scmp.eq.s32.totalorder %s19, 1
      %p68 = por %p66, %p67
      %p70 = scmp.ne.s32.totalorder %s53, %s69
      %p71 = scmp.eq.s32.totalorder %s19, 0
      %p72 = por %p70, %p71
      %s74 = sadd.s32 %s73, 1
      %p77 = scmp.eq.s32.totalorder %s13, 1
      %p78 = scmp.ne.s32.totalorder %s73, %s75
      %p79 = scmp.eq.s32.totalorder %s13, 0
      %p80 = por %p78, %p79
      %p81 = scmp.ne.s32.totalorder %s73, %s75
      %p82 = scmp.eq.s32.totalorder %s18, 1
      %p83 = por %p81, %p82
      %p84 = scmp.ne.s32.totalorder %s75, %s76
      %p85 = scmp.eq.s32.totalorder %s18, 0
      %p86 = por %p84, %p85
      %p87 = scmp.ne.s32.totalorder %s75, %s76
      %p88 = scmp.eq.s32.totalorder %s19, 1
      %p89 = por %p87, %p88
      %p91 = scmp.ne.s32.totalorder %s76, %s90
      %p92 = scmp.eq.s32.totalorder %s19, 0
      %p93 = por %p91, %p92
      %s95 = sadd.s32 %s94, 1
      %p98 = scmp.eq.s32.totalorder %s13, 1
      %p99 = scmp.ne.s32.totalorder %s94, %s96
      %p100 = scmp.eq.s32.totalorder %s13, 0
      %p101 = por %p99, %p100
      %p102 = scmp.ne.s32.totalorder %s94, %s96
      %p103 = scmp.eq.s32.totalorder %s18, 1
      %p104 = por %p102, %p103
      %p105 = scmp.ne.s32.totalorder %s96, %s97
      %p106 = scmp.eq.s32.totalorder %s18, 0
      %p107 = por %p105, %p106
      %p108 = scmp.ne.s32.totalorder %s96, %s97
      %p109 = scmp.eq.s32.totalorder %s19, 1
      %p110 = por %p108, %p109
      %p112 = scmp.ne.s32.totalorder %s97, %s111
      %p113 = scmp.eq.s32.totalorder %s19, 0
      %p114 = por %p112, %p113
      %s116 = sadd.s32 %s115, 1
      %p119 = scmp.eq.s32.totalorder %s13, 1
      %p120 = scmp.ne.s32.totalorder %s115, %s117
      %p121 = scmp.eq.s32.totalorder %s13, 0
      %p122 = por %p120, %p121
      %p123 = scmp.ne.s32.totalorder %s115, %s117
      %p124 = scmp.eq.s32.totalorder %s18, 1
      %p125 = por %p123, %p124
      %p126 = scmp.ne.s32.totalorder %s117, %s118
      %p127 = scmp.eq.s32.totalorder %s18, 0
      %p128 = por %p126, %p127
      %p129 = scmp.ne.s32.totalorder %s117, %s118
      %p130 = scmp.eq.s32.totalorder %s19, 1
      %p131 = por %p129, %p130
      %p133 = scmp.ne.s32.totalorder %s118, %s132
      %p134 = scmp.eq.s32.totalorder %s19, 0
      %p135 = por %p133, %p134
      %s137 = sadd.s32 %s136, 1
      %p140 = scmp.eq.s32.totalorder %s13, 1
      %p141 = scmp.ne.s32.totalorder %s136, %s138
      %p142 = scmp.eq.s32.totalorder %s13, 0
      %p143 = por %p141, %p142
      %p144 = scmp.ne.s32.totalorder %s136, %s138
      %p145 = scmp.eq.s32.totalorder %s18, 1
      %p146 = por %p144, %p145
      %p147 = scmp.ne.s32.totalorder %s138, %s139
      %p148 = scmp.eq.s32.totalorder %s18, 0
      %p149 = por %p147, %p148
      %p150 = scmp.ne.s32.totalorder %s138, %s139
      %p151 = scmp.eq.s32.totalorder %s19, 1
      %p152 = por %p150, %p151
      %p154 = scmp.ne.s32.totalorder %s139, %s153
      %p155 = scmp.eq.s32.totalorder %s19, 0
      %p156 = por %p154, %p155
      %s158 = sadd.s32 %s157, 1
      %p161 = scmp.eq.s32.totalorder %s13, 1
      %p162 = scmp.ne.s32.totalorder %s157, %s159
      %p163 = scmp.eq.s32.totalorder %s13, 0
      %p164 = por %p162, %p163
      %p165 = scmp.ne.s32.totalorder %s157, %s159
      %p166 = scmp.eq.s32.totalorder %s18, 1
      %p167 = por %p165, %p166
      %p168 = scmp.ne.s32.totalorder %s159, %s160
      %p169 = scmp.eq.s32.totalorder %s18, 0
      %p170 = por %p168, %p169
      %p171 = scmp.ne.s32.totalorder %s159, %s160
      %p172 = scmp.eq.s32.totalorder %s19, 1
      %p173 = por %p171, %p172
      %p175 = scmp.ne.s32.totalorder %s160, %s174
      %p176 = scmp.eq.s32.totalorder %s19, 0
      %p177 = por %p175, %p176
      %s178 = ssub.s32 %s13, %s20
      %p179 = scmp.eq.s32.totalorder %s178, 0
      %s181 = sadd.s32 %s180, 1
      %s182 = scalar_select %p179, %s180, %s181
      %p185 = pneg %p179
      %p186 = scmp.eq.s32.totalorder %s13, 1
      %p187 = por %p185, %p186
      %p188 = scmp.ne.s32.totalorder %s180, %s183
      %p189 = scmp.eq.s32.totalorder %s13, 0
      %p190 = por %p188, %p189
      %p191 = scmp.ne.s32.totalorder %s180, %s183
      %p192 = scmp.eq.s32.totalorder %s18, 1
      %p193 = por %p191, %p192
      %p194 = scmp.ne.s32.totalorder %s183, %s184
      %p195 = scmp.eq.s32.totalorder %s18, 0
      %p196 = por %p194, %p195
      %p197 = scmp.ne.s32.totalorder %s183, %s184
      %p198 = scmp.eq.s32.totalorder %s19, 1
      %p199 = por %p197, %p198
      %p201 = scmp.ne.s32.totalorder %s184, %s200
      %p202 = scmp.eq.s32.totalorder %s19, 0
      %p203 = por %p201, %p202
      %p204 = scmp.le.s32.totalorder 1, %s13
      %p205 = scmp.lt.s32.totalorder %s13, 3
      %p206 = pnand %p204, %p205
      %p207 = pneg %p206
      // Predicated region
      $region9: #{_gen16_forward_impl.1} parent=5 // pred_check
        _
      $region10: #{_gen16_forward_impl.1} parent=5 // pred_check_branch
        %209 = sbr.rel (%p206) target = $region12
      $region11: #{_gen16_forward_impl.1} parent=5 // pred_region
        %s210 = ssub.s32 %s13, 1
        // Predicated region
        $region13: #{_gen16_forward_impl.1} parent=11 // pred_check
          %p211 = pneg %p86
        $region14: #{_gen16_forward_impl.1} parent=11 // pred_check_branch
          %213 = sbr.rel (%p211) target = $region16
        $region15: #{_gen16_forward_impl.1} parent=11 // pred_region
          _
        $region16: #{_gen16_forward_impl.1} parent=11 // pred_fallthru
          _
        // Predicated region
        $region17: #{_gen16_forward_impl.1} parent=11 // pred_check
          %p214 = pneg %p107
        $region18: #{_gen16_forward_impl.1} parent=11 // pred_check_branch
          %216 = sbr.rel (%p214) target = $region20
        $region19: #{_gen16_forward_impl.1} parent=11 // pred_region
          _
        $region20: #{_gen16_forward_impl.1} parent=11 // pred_fallthru
          _
        // Predicated region
        $region21: #{_gen16_forward_impl.1} parent=11 // pred_check
          %p217 = pneg %p128
        $region22: #{_gen16_forward_impl.1} parent=11 // pred_check_branch
          %219 = sbr.rel (%p217) target = $region24
        $region23: #{_gen16_forward_impl.1} parent=11 // pred_region
          _
        $region24: #{_gen16_forward_impl.1} parent=11 // pred_fallthru
          _
        // Predicated region
        $region25: #{_gen16_forward_impl.1} parent=11 // pred_check
          %p220 = pneg %p149
        $region26: #{_gen16_forward_impl.1} parent=11 // pred_check_branch
          %222 = sbr.rel (%p220) target = $region28
        $region27: #{_gen16_forward_impl.1} parent=11 // pred_region
          _
        $region28: #{_gen16_forward_impl.1} parent=11 // pred_fallthru
          _
        // Predicated region
        $region29: #{_gen16_forward_impl.1} parent=11 // pred_check
          %p223 = pneg %p170
        $region30: #{_gen16_forward_impl.1} parent=11 // pred_check_branch
          %225 = sbr.rel (%p223) target = $region32
        $region31: #{_gen16_forward_impl.1} parent=11 // pred_region
          _
        $region32: #{_gen16_forward_impl.1} parent=11 // pred_fallthru
          _
      $region12: #{_gen16_forward_impl.1} parent=5 // pred_fallthru
        _
      %p226 = scmp.lt.s32.totalorder %s13, 2
      // Predicated region
      $region33: #{_gen16_forward_impl.1} parent=5 // pred_check
        %p227 = pneg %p226
      $region34: #{_gen16_forward_impl.1} parent=5 // pred_check_branch
        %229 = sbr.rel (%p227) target = $region36
      $region35: #{_gen16_forward_impl.1} parent=5 // pred_region
        // Predicated region
        $region37: #{_gen16_forward_impl.1} parent=35 // pred_check
          %p230 = pneg %p33
        $region38: #{_gen16_forward_impl.1} parent=35 // pred_check_branch
          %232 = sbr.rel (%p230) target = $region40
        $region39: #{_gen16_forward_impl.1} parent=35 // pred_region
          %s233 = smul.u32 13, %s13
          %s234 = ssub.s32 25, %s233
          %p235 = scmp.lt.s32.totalorder %s234, 13
          %s236 = scalar_select %p235, %s234, 13
          %s237 = smul.u32 128, %s236
          %p238 = scmp.lt.s32.totalorder %s233, 24
          %s239 = scalar_select %p238, %s233, 24
          %s240 = smul.addr %s239, 8
          %s241 = scalar_lea.vmem %s0, %s240
          %s242 = smul.u32 13, %s13
          %s243 = ssub.s32 25, %s242
          %p244 = scmp.lt.s32.totalorder %s243, 13
          %s245 = scalar_select %p244, %s243, 13
          %s246 = smul.u32 128, %s245
        $region40: #{_gen16_forward_impl.1} parent=35 // pred_fallthru
          _
        // Predicated region
        $region41: #{_gen16_forward_impl.1} parent=35 // pred_check
          %p247 = pneg %p59
        $region42: #{_gen16_forward_impl.1} parent=35 // pred_check_branch
          %249 = sbr.rel (%p247) target = $region44
        $region43: #{_gen16_forward_impl.1} parent=35 // pred_region
          %s250 = smul.u32 13, %s13
          %s251 = ssub.s32 25, %s250
          %p252 = scmp.lt.s32.totalorder %s251, 13
          %s253 = scalar_select %p252, %s251, 13
          %s254 = smul.u32 128, %s253
          %s255 = smul.u32 %s254, 2
          %p256 = scmp.lt.s32.totalorder %s250, 24
          %s257 = scalar_select %p256, %s250, 24
          %s258 = smul.addr %s257, 2
          %s259 = smul.addr %s258, 8
          %s260 = scalar_lea.vmem %s1, %s259
          %s261 = smul.u32 13, %s13
          %s262 = ssub.s32 25, %s261
          %p263 = scmp.lt.s32.totalorder %s262, 13
          %s264 = scalar_select %p263, %s262, 13
          %s265 = smul.u32 128, %s264
          %s266 = smul.u32 %s265, 2
        $region44: #{_gen16_forward_impl.1} parent=35 // pred_fallthru
          _
      $region36: #{_gen16_forward_impl.1} parent=5 // pred_fallthru
        _
      %p267 = scmp.le.s32.totalorder 1, %s13
      %p268 = scmp.lt.s32.totalorder %s13, 3
      %p269 = pnand %p267, %p268
      %p270 = pneg %p269
      // Predicated region
      $region45: #{_gen16_forward_impl.1} parent=5 // pred_check
        _
      $region46: #{_gen16_forward_impl.1} parent=5 // pred_check_branch
        %272 = sbr.rel (%p269) target = $region48
      $region47: #{_gen16_forward_impl.1} parent=5 // pred_region
        %s273 = ssub.s32 %s13, 1
        %s274 = smul.u32 13, %s18
        %s275 = ssub.s32 25, %s274
        %p276 = scmp.lt.s32.totalorder %s275, 13
        %s277 = scalar_select %p276, %s275, 13
        %s278 = smul.u32 128, %s277
        %p279 = scmp.lt.s32.totalorder %s274, 24
        %s280 = scalar_select %p279, %s274, 24
        %s281 = smul.addr %s280, 8
        %s282 = scalar_lea.vmem %s0, %s281
        %p283 = pneg %p39
        %p284 = pneg %p36
        %s285 = smul.u32 13, %s18
        %s286 = ssub.s32 25, %s285
        %p287 = scmp.lt.s32.totalorder %s286, 13
        %s288 = scalar_select %p287, %s286, 13
        %s289 = smul.u32 128, %s288
        %s290 = smul.u32 %s289, 2
        %p291 = scmp.lt.s32.totalorder %s285, 24
        %s292 = scalar_select %p291, %s285, 24
        %s293 = smul.addr %s292, 2
        %s294 = smul.addr %s293, 8
        %s295 = scalar_lea.vmem %s1, %s294
        %p296 = pneg %p65
        %p297 = pneg %p62
        %p298 = pneg %p86
        %p299 = pneg %p83
        %p300 = pneg %p107
        %p301 = pneg %p104
        %p302 = pneg %p128
        %p303 = pneg %p125
        %p304 = pneg %p149
        %p305 = pneg %p146
        %p306 = pneg %p170
        %p307 = pneg %p167
        %p308 = pneg %p196
        %p309 = pneg %p193
        %s310 = sand.u32 %s183, 1
        %s311 = sand.u32 %s183, 1
        %s312 = smul.addr %s311, 208
        %s313 = scalar_lea.vmem [#allocation2], %s312
        %s314 = smul.u32 13, %s18
        %s315 = ssub.s32 25, %s314
        %p316 = scmp.lt.s32.totalorder %s315, 13
        %s317 = scalar_select %p316, %s315, 13
        %s318 = smul.u32 128, %s317
        %p319 = scmp.lt.s32.totalorder %s314, 24
        %s320 = scalar_select %p319, %s314, 24
        %s321 = smul.addr %s320, 8
        %s322 = scalar_lea.vmem %s0, %s321
        %s323 = smul.u32 13, %s18
        %s324 = ssub.s32 25, %s323
        %p325 = scmp.lt.s32.totalorder %s324, 13
        %s326 = scalar_select %p325, %s324, 13
        %s327 = smul.u32 128, %s326
        %s328 = smul.u32 13, %s18
        %s329 = ssub.s32 25, %s328
        %p330 = scmp.lt.s32.totalorder %s329, 13
        %s331 = scalar_select %p330, %s329, 13
        %s332 = smul.u32 128, %s331
        %s333 = smul.u32 %s332, 2
        %p334 = scmp.lt.s32.totalorder %s328, 24
        %s335 = scalar_select %p334, %s328, 24
        %s336 = smul.addr %s335, 2
        %s337 = smul.addr %s336, 8
        %s338 = scalar_lea.vmem %s1, %s337
        %s339 = smul.u32 13, %s18
        %s340 = ssub.s32 25, %s339
        %p341 = scmp.lt.s32.totalorder %s340, 13
        %s342 = scalar_select %p341, %s340, 13
        %s343 = smul.u32 128, %s342
        %s344 = smul.u32 %s343, 2
        %s345 = smul.u32 13, %s18
        %s346 = ssub.s32 25, %s345
        %p347 = scmp.lt.s32.totalorder %s346, 13
        %s348 = scalar_select %p347, %s346, 13
        %s349 = smul.u32 128, %s348
        %s350 = smul.u32 %s349, 2
        %v351 = vld [vmem:[%s338] sm:$0xff]
        %v352 = vld [vmem:[%s338 + $0x8] sm:$0xff]
        %v353 = vld [vmem:[%s338 + $0x10] sm:$0xff]
        %v354 = vld [vmem:[%s338 + $0x18] sm:$0xff]
        %v355 = vld [vmem:[%s338 + $0x20] sm:$0xff]
        %v356 = vld [vmem:[%s338 + $0x28] sm:$0xff]
        %v357 = vld [vmem:[%s338 + $0x30] sm:$0xff]
        %v358 = vld [vmem:[%s338 + $0x38] sm:$0xff]
        %v359 = vld [vmem:[%s338 + $0x40] sm:$0xff]
        %v360 = vld [vmem:[%s338 + $0x48] sm:$0xff]
        %v361 = vld [vmem:[%s338 + $0x50] sm:$0xff]
        %v362 = vld [vmem:[%s338 + $0x58] sm:$0xff]
        %v363 = vld [vmem:[%s338 + $0x60] sm:$0xff]
        %v364 = vld [vmem:[%s338 + $0x68] sm:$0xff]
        %v365 = vld [vmem:[%s338 + $0x70] sm:$0xff]
        %v366 = vld [vmem:[%s338 + $0x78] sm:$0xff]
        %v367 = vld [vmem:[%s338 + $0x80] sm:$0xff]
        %v368 = vld [vmem:[%s338 + $0x88] sm:$0xff]
        %v369 = vld [vmem:[%s338 + $0x90] sm:$0xff]
        %v370 = vld [vmem:[%s338 + $0x98] sm:$0xff]
        %v371 = vld [vmem:[%s338 + $0xa0] sm:$0xff]
        %v372 = vld [vmem:[%s338 + $0xa8] sm:$0xff]
        %v373 = vld [vmem:[%s338 + $0xb0] sm:$0xff]
        %v374 = vld [vmem:[%s338 + $0xb8] sm:$0xff]
        %v375 = vld [vmem:[%s338 + $0xc0] sm:$0xff]
        %v376 = vld [vmem:[%s338 + $0xc8] sm:$0xff]
        %v377 = vld [vmem:[%s322] sm:$0xff]
        %v378 = vld [vmem:[%s322 + $0x8] sm:$0xff]
        %v379 = vld [vmem:[%s322 + $0x10] sm:$0xff]
        %v380 = vld [vmem:[%s322 + $0x18] sm:$0xff]
        %v381 = vld [vmem:[%s322 + $0x20] sm:$0xff]
        %v382 = vld [vmem:[%s322 + $0x28] sm:$0xff]
        %v383 = vld [vmem:[%s322 + $0x30] sm:$0xff]
        %v384 = vld [vmem:[%s322 + $0x38] sm:$0xff]
        %v385 = vld [vmem:[%s322 + $0x40] sm:$0xff]
        %v386 = vld [vmem:[%s322 + $0x48] sm:$0xff]
        %v387 = vld [vmem:[%s322 + $0x50] sm:$0xff]
        %v388 = vld [vmem:[%s322 + $0x58] sm:$0xff]
        %v389 = vld [vmem:[%s322 + $0x60] sm:$0xff]
        %v390 = vld [vmem:[%s2] sm:$0xff]
        %v391 = vld [vmem:[%s2 + $0x8] sm:$0xff]
        %v392 = vld [vmem:[%s2 + $0x10] sm:$0xff]
        %v393 = vld [vmem:[%s2 + $0x18] sm:$0xff]
        %v394 = vld [vmem:[%s2 + $0x20] sm:$0xff]
        %v395 = vld [vmem:[%s2 + $0x28] sm:$0xff]
        %v396 = vld [vmem:[%s2 + $0x30] sm:$0xff]
        %v397 = vld [vmem:[%s2 + $0x38] sm:$0xff]
        %v398 = vld [vmem:[%s2 + $0x40] sm:$0xff]
        %v399 = vld [vmem:[%s2 + $0x48] sm:$0xff]
        %v400 = vld [vmem:[%s2 + $0x50] sm:$0xff]
        %v401 = vld [vmem:[%s2 + $0x58] sm:$0xff]
        %v402 = vld [vmem:[%s2 + $0x60] sm:$0xff]
        %v403 = vld [vmem:[%s2 + $0x68] sm:$0xff]
        %v404 = vld [vmem:[%s2 + $0x70] sm:$0xff]
        %v405 = vld [vmem:[%s2 + $0x78] sm:$0xff]
        %v406 = vld [vmem:[%s3] sm:$0xff]
        %v407 = vld [vmem:[%s3 + $0x8] sm:$0xff]
        %v408 = vld [vmem:[%s3 + $0x10] sm:$0xff]
        %v409 = vld [vmem:[%s3 + $0x18] sm:$0xff]
        %v410 = vld [vmem:[%s3 + $0x20] sm:$0xff]
        %v411 = vld [vmem:[%s3 + $0x28] sm:$0xff]
        %v412 = vld [vmem:[%s3 + $0x30] sm:$0xff]
        %v413 = vld [vmem:[%s3 + $0x38] sm:$0xff]
        %v414 = vld [vmem:[%s3 + $0x40] sm:$0xff]
        %v415 = vld [vmem:[%s3 + $0x48] sm:$0xff]
        %v416 = vld [vmem:[%s3 + $0x50] sm:$0xff]
        %v417 = vld [vmem:[%s3 + $0x58] sm:$0xff]
        %v418 = vld [vmem:[%s3 + $0x60] sm:$0xff]
        %v419 = vld [vmem:[%s3 + $0x68] sm:$0xff]
        %v420 = vld [vmem:[%s3 + $0x70] sm:$0xff]
        %v421 = vld [vmem:[%s3 + $0x78] sm:$0xff]
        %v422 = vld [vmem:[%s3 + $0x80] sm:$0xff]
        %v423 = vld [vmem:[%s3 + $0x88] sm:$0xff]
        %v424 = vld [vmem:[%s3 + $0x90] sm:$0xff]
        %v425 = vld [vmem:[%s3 + $0x98] sm:$0xff]
        %v426 = vld [vmem:[%s3 + $0xa0] sm:$0xff]
        %v427 = vld [vmem:[%s3 + $0xa8] sm:$0xff]
        %v428 = vld [vmem:[%s3 + $0xb0] sm:$0xff]
        %v429 = vld [vmem:[%s3 + $0xb8] sm:$0xff]
        %v430 = vld [vmem:[%s3 + $0xc0] sm:$0xff]
        %v431 = vld [vmem:[%s3 + $0xc8] sm:$0xff]
        %v432 = vld [vmem:[%s3 + $0xd0] sm:$0xff]
        %v433 = vld [vmem:[%s3 + $0xd8] sm:$0xff]
        %v434 = vld [vmem:[%s3 + $0xe0] sm:$0xff]
        %v435 = vld [vmem:[%s3 + $0xe8] sm:$0xff]
        %v436 = vld [vmem:[%s3 + $0xf0] sm:$0xff]
        %v437 = vld [vmem:[%s3 + $0xf8] sm:$0xff]
        %438 = vmatprep.subr.mxu0 0.0
        %439 = vmatpush1.msra.mxu0 %v421
        %440 = vmatprep.subr.mxu0 0.0
        %441 = vmatpush1.msra.mxu0 %v420
        %442 = vmatprep.subr.mxu0 0.0
        %443 = vmatpush1.msra.mxu0 %v419
        %444 = vmatprep.subr.mxu0 0.0
        %445 = vmatpush1.msra.mxu0 %v418
        %446 = vmatprep.subr.mxu0 0.0
        %447 = vmatpush1.msra.mxu0 %v417
        %448 = vmatprep.subr.mxu0 0.0
        %449 = vmatpush1.msra.mxu0 %v416
        %450 = vmatprep.subr.mxu0 0.0
        %451 = vmatpush1.msra.mxu0 %v415
        %452 = vmatprep.subr.mxu0 0.0
        %453 = vmatpush1.msra.mxu0 %v414
        %454 = vmatprep.subr.mxu0 0.0
        %455 = vmatpush1.msra.mxu0 %v413
        %456 = vmatprep.subr.mxu0 0.0
        %457 = vmatpush1.msra.mxu0 %v412
        %458 = vmatprep.subr.mxu0 0.0
        %459 = vmatpush1.msra.mxu0 %v411
        %460 = vmatprep.subr.mxu0 0.0
        %461 = vmatpush1.msra.mxu0 %v410
        %462 = vmatprep.subr.mxu0 0.0
        %463 = vmatpush1.msra.mxu0 %v409
        %464 = vmatprep.subr.mxu0 0.0
        %465 = vmatpush1.msra.mxu0 %v408
        %466 = vmatprep.subr.mxu0 0.0
        %467 = vmatpush1.msra.mxu0 %v407
        %468 = vmatprep.subr.mxu0 0.0
        %469 = vmatpush1.msra.mxu0 %v406
        %470 = vmatprep.subr.mxu0 0.0
        %471 = vmatpush2.msra.mxu0 %v437
        %472 = vmatprep.subr.mxu0 0.0
        %473 = vmatpush2.msra.mxu0 %v436
        %474 = vmatprep.subr.mxu0 0.0
        %475 = vmatpush2.msra.mxu0 %v435
        %476 = vmatprep.subr.mxu0 0.0
        %477 = vmatpush2.msra.mxu0 %v434
        %478 = vmatprep.subr.mxu0 0.0
        %479 = vmatpush2.msra.mxu0 %v433
        %480 = vmatprep.subr.mxu0 0.0
        %481 = vmatpush2.msra.mxu0 %v432
        %482 = vmatprep.subr.mxu0 0.0
        %483 = vmatpush2.msra.mxu0 %v431
        %484 = vmatprep.subr.mxu0 0.0
        %485 = vmatpush2.msra.mxu0 %v430
        %486 = vmatprep.subr.mxu0 0.0
        %487 = vmatpush2.msra.mxu0 %v429
        %488 = vmatprep.subr.mxu0 0.0
        %489 = vmatpush2.msra.mxu0 %v428
        %490 = vmatprep.subr.mxu0 0.0
        %491 = vmatpush2.msra.mxu0 %v427
        %492 = vmatprep.subr.mxu0 0.0
        %493 = vmatpush2.msra.mxu0 %v426
        %494 = vmatprep.subr.mxu0 0.0
        %495 = vmatpush2.msra.mxu0 %v425
        %496 = vmatprep.subr.mxu0 0.0
        %497 = vmatpush2.msra.mxu0 %v424
        %498 = vmatprep.subr.mxu0 0.0
        %499 = vmatpush2.msra.mxu0 %v423
        %500 = vmatprep.subr.mxu0 0.0
        %501 = vmatpush2.msra.mxu0 %v422
        %502 = vmatprep.mubr.f32.mxu0 %v352
        %503 = vmatmul.mubr.f32.gmra.mxu0 %v351
        %v504 = vpop.f32.mrf.mxu0
        %v505 = vadd.f32 0.0, %v504
        %v506 = vpop.f32.mrf.mxu0
        %507 = vmatprep.mubr.f32.mxu0 %v354
        %508 = vmatmul.mubr.f32.gmra.mxu0 %v353
        %v509 = vpop.f32.mrf.mxu0
        %v510 = vadd.f32 0.0, %v509
        %v511 = vpop.f32.mrf.mxu0
        %512 = vmatprep.mubr.f32.mxu0 %v356
        %513 = vmatmul.mubr.f32.gmra.mxu0 %v355
        %v514 = vpop.f32.mrf.mxu0
        %v515 = vadd.f32 0.0, %v514
        %v516 = vpop.f32.mrf.mxu0
        %517 = vmatprep.mubr.f32.mxu0 %v358
        %518 = vmatmul.mubr.f32.gmra.mxu0 %v357
        %v519 = vpop.f32.mrf.mxu0
        %v520 = vadd.f32 0.0, %v519
        %v521 = vpop.f32.mrf.mxu0
        %522 = vmatprep.mubr.f32.mxu0 %v360
        %523 = vmatmul.mubr.f32.gmra.mxu0 %v359
        %v524 = vpop.f32.mrf.mxu0
        %v525 = vadd.f32 0.0, %v524
        %v526 = vpop.f32.mrf.mxu0
        %527 = vmatprep.mubr.f32.mxu0 %v362
        %528 = vmatmul.mubr.f32.gmra.mxu0 %v361
        %v529 = vpop.f32.mrf.mxu0
        %v530 = vadd.f32 0.0, %v529
        %v531 = vpop.f32.mrf.mxu0
        %532 = vmatprep.mubr.f32.mxu0 %v364
        %533 = vmatmul.mubr.f32.gmra.mxu0 %v363
        %v534 = vpop.f32.mrf.mxu0
        %v535 = vadd.f32 0.0, %v534
        %v536 = vpop.f32.mrf.mxu0
        %537 = vmatprep.mubr.f32.mxu0 %v366
        %538 = vmatmul.mubr.f32.gmra.mxu0 %v365
        %v539 = vpop.f32.mrf.mxu0
        %v540 = vadd.f32 0.0, %v539
        %v541 = vpop.f32.mrf.mxu0
        %542 = vmatprep.mubr.f32.mxu0 %v368
        %543 = vmatmul.mubr.f32.gmra.mxu0 %v367
        %v544 = vpop.f32.mrf.mxu0
        %v545 = vadd.f32 0.0, %v544
        %v546 = vpop.f32.mrf.mxu0
        %547 = vmatprep.mubr.f32.mxu0 %v370
        %548 = vmatmul.mubr.f32.gmra.mxu0 %v369
        %v549 = vpop.f32.mrf.mxu0
        %v550 = vadd.f32 0.0, %v549
        %v551 = vpop.f32.mrf.mxu0
        %552 = vmatprep.mubr.f32.mxu0 %v372
        %553 = vmatmul.mubr.f32.gmra.mxu0 %v371
        %v554 = vpop.f32.mrf.mxu0
        %v555 = vadd.f32 0.0, %v554
        %v556 = vpop.f32.mrf.mxu0
        %557 = vmatprep.mubr.f32.mxu0 %v374
        %558 = vmatmul.mubr.f32.gmra.mxu0 %v373
        %v559 = vpop.f32.mrf.mxu0
        %v560 = vadd.f32 0.0, %v559
        %v561 = vpop.f32.mrf.mxu0
        %562 = vmatprep.mubr.f32.mxu0 %v376
        %563 = vmatmul.mubr.f32.gmra.mxu0 %v375
        %v564 = vpop.f32.mrf.mxu0
        %v565 = vadd.f32 0.0, %v564
        %v566 = vpop.f32.mrf.mxu0
        %567 = vdwg.mxu0
        %568 = vmatprep.subr.mxu0 0.0
        %569 = vmatpush1.msra.mxu0 %v405
        %570 = vmatprep.subr.mxu0 0.0
        %571 = vmatpush1.msra.mxu0 %v404
        %572 = vmatprep.subr.mxu0 0.0
        %573 = vmatpush1.msra.mxu0 %v403
        %574 = vmatprep.subr.mxu0 0.0
        %575 = vmatpush1.msra.mxu0 %v402
        %576 = vmatprep.subr.mxu0 0.0
        %577 = vmatpush1.msra.mxu0 %v401
        %578 = vmatprep.subr.mxu0 0.0
        %579 = vmatpush1.msra.mxu0 %v400
        %580 = vmatprep.subr.mxu0 0.0
        %581 = vmatpush1.msra.mxu0 %v399
        %582 = vmatprep.subr.mxu0 0.0
        %583 = vmatpush1.msra.mxu0 %v398
        %584 = vmatprep.subr.mxu0 0.0
        %585 = vmatpush1.msra.mxu0 %v397
        %586 = vmatprep.subr.mxu0 0.0
        %587 = vmatpush1.msra.mxu0 %v396
        %588 = vmatprep.subr.mxu0 0.0
        %589 = vmatpush1.msra.mxu0 %v395
        %590 = vmatprep.subr.mxu0 0.0
        %591 = vmatpush1.msra.mxu0 %v394
        %592 = vmatprep.subr.mxu0 0.0
        %593 = vmatpush1.msra.mxu0 %v393
        %594 = vmatprep.subr.mxu0 0.0
        %595 = vmatpush1.msra.mxu0 %v392
        %596 = vmatprep.subr.mxu0 0.0
        %597 = vmatpush1.msra.mxu0 %v391
        %598 = vmatprep.subr.mxu0 0.0
        %599 = vmatpush1.msra.mxu0 %v390
        %600 = vmatprep.subr.mxu0 0.0
        %601 = vmatpush2.msra.mxu0 0.0
        %602 = vmatprep.subr.mxu0 0.0
        %603 = vmatpush2.msra.mxu0 0.0
        %604 = vmatprep.subr.mxu0 0.0
        %605 = vmatpush2.msra.mxu0 0.0
        %606 = vmatprep.subr.mxu0 0.0
        %607 = vmatpush2.msra.mxu0 0.0
        %608 = vmatprep.subr.mxu0 0.0
        %609 = vmatpush2.msra.mxu0 0.0
        %610 = vmatprep.subr.mxu0 0.0
        %611 = vmatpush2.msra.mxu0 0.0
        %612 = vmatprep.subr.mxu0 0.0
        %613 = vmatpush2.msra.mxu0 0.0
        %614 = vmatprep.subr.mxu0 0.0
        %615 = vmatpush2.msra.mxu0 0.0
        %616 = vmatprep.subr.mxu0 0.0
        %617 = vmatpush2.msra.mxu0 0.0
        %618 = vmatprep.subr.mxu0 0.0
        %619 = vmatpush2.msra.mxu0 0.0
        %620 = vmatprep.subr.mxu0 0.0
        %621 = vmatpush2.msra.mxu0 0.0
        %622 = vmatprep.subr.mxu0 0.0
        %623 = vmatpush2.msra.mxu0 0.0
        %624 = vmatprep.subr.mxu0 0.0
        %625 = vmatpush2.msra.mxu0 0.0
        %626 = vmatprep.subr.mxu0 0.0
        %627 = vmatpush2.msra.mxu0 0.0
        %628 = vmatprep.subr.mxu0 0.0
        %629 = vmatpush2.msra.mxu0 0.0
        %630 = vmatprep.subr.mxu0 0.0
        %631 = vmatpush2.msra.mxu0 0.0
        %632 = vmatprep.mubr.f32.mxu0 0.0
        %633 = vmatmul.mubr.f32.gmra.mxu0 %v377
        %v634 = vpop.f32.mrf.mxu0
        %v635 = vadd.f32 %v505, %v634
        %v636 = vpop.f32.mrf.mxu0
        %637 = vmatprep.mubr.f32.mxu0 0.0
        %638 = vmatmul.mubr.f32.gmra.mxu0 %v378
        %v639 = vpop.f32.mrf.mxu0
        %v640 = vadd.f32 %v510, %v639
        %v641 = vpop.f32.mrf.mxu0
        %642 = vmatprep.mubr.f32.mxu0 0.0
        %643 = vmatmul.mubr.f32.gmra.mxu0 %v379
        %v644 = vpop.f32.mrf.mxu0
        %v645 = vadd.f32 %v515, %v644
        %v646 = vpop.f32.mrf.mxu0
        %647 = vmatprep.mubr.f32.mxu0 0.0
        %648 = vmatmul.mubr.f32.gmra.mxu0 %v380
        %v649 = vpop.f32.mrf.mxu0
        %v650 = vadd.f32 %v520, %v649
        %v651 = vpop.f32.mrf.mxu0
        %652 = vmatprep.mubr.f32.mxu0 0.0
        %653 = vmatmul.mubr.f32.gmra.mxu0 %v381
        %v654 = vpop.f32.mrf.mxu0
        %v655 = vadd.f32 %v525, %v654
        %v656 = vpop.f32.mrf.mxu0
        %657 = vmatprep.mubr.f32.mxu0 0.0
        %658 = vmatmul.mubr.f32.gmra.mxu0 %v382
        %v659 = vpop.f32.mrf.mxu0
        %v660 = vadd.f32 %v530, %v659
        %v661 = vpop.f32.mrf.mxu0
        %662 = vmatprep.mubr.f32.mxu0 0.0
        %663 = vmatmul.mubr.f32.gmra.mxu0 %v383
        %v664 = vpop.f32.mrf.mxu0
        %v665 = vadd.f32 %v535, %v664
        %v666 = vpop.f32.mrf.mxu0
        %667 = vmatprep.mubr.f32.mxu0 0.0
        %668 = vmatmul.mubr.f32.gmra.mxu0 %v384
        %v669 = vpop.f32.mrf.mxu0
        %v670 = vadd.f32 %v540, %v669
        %v671 = vpop.f32.mrf.mxu0
        %672 = vmatprep.mubr.f32.mxu0 0.0
        %673 = vmatmul.mubr.f32.gmra.mxu0 %v385
        %v674 = vpop.f32.mrf.mxu0
        %v675 = vadd.f32 %v545, %v674
        %v676 = vpop.f32.mrf.mxu0
        %677 = vmatprep.mubr.f32.mxu0 0.0
        %678 = vmatmul.mubr.f32.gmra.mxu0 %v386
        %v679 = vpop.f32.mrf.mxu0
        %v680 = vadd.f32 %v550, %v679
        %v681 = vpop.f32.mrf.mxu0
        %682 = vmatprep.mubr.f32.mxu0 0.0
        %683 = vmatmul.mubr.f32.gmra.mxu0 %v387
        %v684 = vpop.f32.mrf.mxu0
        %v685 = vadd.f32 %v555, %v684
        %v686 = vpop.f32.mrf.mxu0
        %687 = vmatprep.mubr.f32.mxu0 0.0
        %688 = vmatmul.mubr.f32.gmra.mxu0 %v388
        %v689 = vpop.f32.mrf.mxu0
        %v690 = vadd.f32 %v560, %v689
        %v691 = vpop.f32.mrf.mxu0
        %692 = vmatprep.mubr.f32.mxu0 0.0
        %693 = vmatmul.mubr.f32.gmra.mxu0 %v389
        %v694 = vpop.f32.mrf.mxu0
        %v695 = vadd.f32 %v565, %v694
        %v696 = vpop.f32.mrf.mxu0
        %697 = vdwg.mxu0
        %v698 = vld [vmem:[%s4] sm:$0x1]
        %v700 = vlaneseq
        %v701 = vshrl.u32 %v700, 7
        %v702 = vsub.s32 0, %v701
        %v703 = vrot.slane %v698, %v702
        %v705 = vadd.f32 %v635, %v703
        %v706 = vadd.f32 %v640, %v703
        %v707 = vadd.f32 %v645, %v703
        %v708 = vadd.f32 %v650, %v703
        %v709 = vadd.f32 %v655, %v703
        %v710 = vadd.f32 %v660, %v703
        %v711 = vadd.f32 %v665, %v703
        %v712 = vadd.f32 %v670, %v703
        %v713 = vadd.f32 %v675, %v703
        %v714 = vadd.f32 %v680, %v703
        %v715 = vadd.f32 %v685, %v703
        %v716 = vadd.f32 %v690, %v703
        %v717 = vadd.f32 %v695, %v703
        %v718 = vld [vmem:[%s5] sm:$0xff]
        %v719 = vld [vmem:[%s5 + $0x8] sm:$0xff]
        %v720 = vld [vmem:[%s5 + $0x10] sm:$0xff]
        %v721 = vld [vmem:[%s5 + $0x18] sm:$0xff]
        %v722 = vld [vmem:[%s5 + $0x20] sm:$0xff]
        %v723 = vld [vmem:[%s5 + $0x28] sm:$0xff]
        %v724 = vld [vmem:[%s5 + $0x30] sm:$0xff]
        %v725 = vld [vmem:[%s5 + $0x38] sm:$0xff]
        %v726 = vld [vmem:[%s5 + $0x40] sm:$0xff]
        %v727 = vld [vmem:[%s5 + $0x48] sm:$0xff]
        %v728 = vld [vmem:[%s5 + $0x50] sm:$0xff]
        %v729 = vld [vmem:[%s5 + $0x58] sm:$0xff]
        %v730 = vld [vmem:[%s5 + $0x60] sm:$0xff]
        %v731 = vld [vmem:[%s5 + $0x68] sm:$0xff]
        %v732 = vld [vmem:[%s5 + $0x70] sm:$0xff]
        %v733 = vld [vmem:[%s5 + $0x78] sm:$0xff]
        %v734 = vld [vmem:[%s5 + $0x80] sm:$0xff]
        %v735 = vld [vmem:[%s5 + $0x88] sm:$0xff]
        %v736 = vld [vmem:[%s5 + $0x90] sm:$0xff]
        %v737 = vld [vmem:[%s5 + $0x98] sm:$0xff]
        %v738 = vld [vmem:[%s5 + $0xa0] sm:$0xff]
        %v739 = vld [vmem:[%s5 + $0xa8] sm:$0xff]
        %v740 = vld [vmem:[%s5 + $0xb0] sm:$0xff]
        %v741 = vld [vmem:[%s5 + $0xb8] sm:$0xff]
        %v742 = vld [vmem:[%s5 + $0xc0] sm:$0xff]
        %v743 = vld [vmem:[%s5 + $0xc8] sm:$0xff]
        %v744 = vld [vmem:[%s5 + $0xd0] sm:$0xff]
        %v745 = vld [vmem:[%s5 + $0xd8] sm:$0xff]
        %v746 = vld [vmem:[%s5 + $0xe0] sm:$0xff]
        %v747 = vld [vmem:[%s5 + $0xe8] sm:$0xff]
        %v748 = vld [vmem:[%s5 + $0xf0] sm:$0xff]
        %v749 = vld [vmem:[%s5 + $0xf8] sm:$0xff]
        %v750 = vld [vmem:[%s6] sm:$0x3]
        %v752 = vlaneseq
        %v753 = vshrl.u32 %v752, 7
        %v754 = vsub.s32 0, %v753
        %v755 = vrot.slane %v750, %v754
        %v756 = vlaneseq
        %v757 = vshrl.u32 %v756, 7
        %v758 = vsub.s32 1, %v757
        %v759 = vrot.slane %v750, %v758
        %762 = vmatprep.subr.mxu0 %v749
        %763 = vmatpush1.msra.mxu0 %v748
        %764 = vmatprep.subr.mxu0 %v747
        %765 = vmatpush1.msra.mxu0 %v746
        %766 = vmatprep.subr.mxu0 %v745
        %767 = vmatpush1.msra.mxu0 %v744
        %768 = vmatprep.subr.mxu0 %v743
        %769 = vmatpush1.msra.mxu0 %v742
        %770 = vmatprep.subr.mxu0 %v741
        %771 = vmatpush1.msra.mxu0 %v740
        %772 = vmatprep.subr.mxu0 %v739
        %773 = vmatpush1.msra.mxu0 %v738
        %774 = vmatprep.subr.mxu0 %v737
        %775 = vmatpush1.msra.mxu0 %v736
        %776 = vmatprep.subr.mxu0 %v735
        %777 = vmatpush1.msra.mxu0 %v734
        %778 = vmatprep.subr.mxu0 %v733
        %779 = vmatpush1.msra.mxu0 %v732
        %780 = vmatprep.subr.mxu0 %v731
        %781 = vmatpush1.msra.mxu0 %v730
        %782 = vmatprep.subr.mxu0 %v729
        %783 = vmatpush1.msra.mxu0 %v728
        %784 = vmatprep.subr.mxu0 %v727
        %785 = vmatpush1.msra.mxu0 %v726
        %786 = vmatprep.subr.mxu0 %v725
        %787 = vmatpush1.msra.mxu0 %v724
        %788 = vmatprep.subr.mxu0 %v723
        %789 = vmatpush1.msra.mxu0 %v722
        %790 = vmatprep.subr.mxu0 %v721
        %791 = vmatpush1.msra.mxu0 %v720
        %792 = vmatprep.subr.mxu0 %v719
        %793 = vmatpush1.msra.mxu0 %v718
        %794 = vmatprep.subr.mxu0 0.0
        %795 = vmatpush2.msra.mxu0 0.0
        %796 = vmatprep.subr.mxu0 0.0
        %797 = vmatpush2.msra.mxu0 0.0
        %798 = vmatprep.subr.mxu0 0.0
        %799 = vmatpush2.msra.mxu0 0.0
        %800 = vmatprep.subr.mxu0 0.0
        %801 = vmatpush2.msra.mxu0 0.0
        %802 = vmatprep.subr.mxu0 0.0
        %803 = vmatpush2.msra.mxu0 0.0
        %804 = vmatprep.subr.mxu0 0.0
        %805 = vmatpush2.msra.mxu0 0.0
        %806 = vmatprep.subr.mxu0 0.0
        %807 = vmatpush2.msra.mxu0 0.0
        %808 = vmatprep.subr.mxu0 0.0
        %809 = vmatpush2.msra.mxu0 0.0
        %810 = vmatprep.subr.mxu0 0.0
        %811 = vmatpush2.msra.mxu0 0.0
        %812 = vmatprep.subr.mxu0 0.0
        %813 = vmatpush2.msra.mxu0 0.0
        %814 = vmatprep.subr.mxu0 0.0
        %815 = vmatpush2.msra.mxu0 0.0
        %816 = vmatprep.subr.mxu0 0.0
        %817 = vmatpush2.msra.mxu0 0.0
        %818 = vmatprep.subr.mxu0 0.0
        %819 = vmatpush2.msra.mxu0 0.0
        %820 = vmatprep.subr.mxu0 0.0
        %821 = vmatpush2.msra.mxu0 0.0
        %822 = vmatprep.subr.mxu0 0.0
        %823 = vmatpush2.msra.mxu0 0.0
        %824 = vmatprep.subr.mxu0 0.0
        %825 = vmatpush2.msra.mxu0 0.0
        %826 = vmatprep.mubr.f32.mxu0 0.0
        %827 = vmatmul.mubr.f32.gmra.mxu0 %v705
        %v828 = vpop.f32.mrf.mxu0
        %v829 = vadd.f32 %v755, %v828
        %v830 = vpop.f32.mrf.mxu0
        %v831 = vadd.f32 %v759, %v830
        %832 = vmatprep.mubr.f32.mxu0 0.0
        %833 = vmatmul.mubr.f32.gmra.mxu0 %v706
        %v834 = vpop.f32.mrf.mxu0
        %v835 = vadd.f32 %v755, %v834
        %v836 = vpop.f32.mrf.mxu0
        %v837 = vadd.f32 %v759, %v836
        %838 = vmatprep.mubr.f32.mxu0 0.0
        %839 = vmatmul.mubr.f32.gmra.mxu0 %v707
        %v840 = vpop.f32.mrf.mxu0
        %v841 = vadd.f32 %v755, %v840
        %v842 = vpop.f32.mrf.mxu0
        %v843 = vadd.f32 %v759, %v842
        %844 = vmatprep.mubr.f32.mxu0 0.0
        %845 = vmatmul.mubr.f32.gmra.mxu0 %v708
        %v846 = vpop.f32.mrf.mxu0
        %v847 = vadd.f32 %v755, %v846
        %v848 = vpop.f32.mrf.mxu0
        %v849 = vadd.f32 %v759, %v848
        %850 = vmatprep.mubr.f32.mxu0 0.0
        %851 = vmatmul.mubr.f32.gmra.mxu0 %v709
        %v852 = vpop.f32.mrf.mxu0
        %v853 = vadd.f32 %v755, %v852
        %v854 = vpop.f32.mrf.mxu0
        %v855 = vadd.f32 %v759, %v854
        %856 = vmatprep.mubr.f32.mxu0 0.0
        %857 = vmatmul.mubr.f32.gmra.mxu0 %v710
        %v858 = vpop.f32.mrf.mxu0
        %v859 = vadd.f32 %v755, %v858
        %v860 = vpop.f32.mrf.mxu0
        %v861 = vadd.f32 %v759, %v860
        %862 = vmatprep.mubr.f32.mxu0 0.0
        %863 = vmatmul.mubr.f32.gmra.mxu0 %v711
        %v864 = vpop.f32.mrf.mxu0
        %v865 = vadd.f32 %v755, %v864
        %v866 = vpop.f32.mrf.mxu0
        %v867 = vadd.f32 %v759, %v866
        %868 = vmatprep.mubr.f32.mxu0 0.0
        %869 = vmatmul.mubr.f32.gmra.mxu0 %v712
        %v870 = vpop.f32.mrf.mxu0
        %v871 = vadd.f32 %v755, %v870
        %v872 = vpop.f32.mrf.mxu0
        %v873 = vadd.f32 %v759, %v872
        %874 = vmatprep.mubr.f32.mxu0 0.0
        %875 = vmatmul.mubr.f32.gmra.mxu0 %v713
        %v876 = vpop.f32.mrf.mxu0
        %v877 = vadd.f32 %v755, %v876
        %v878 = vpop.f32.mrf.mxu0
        %v879 = vadd.f32 %v759, %v878
        %880 = vmatprep.mubr.f32.mxu0 0.0
        %881 = vmatmul.mubr.f32.gmra.mxu0 %v714
        %v882 = vpop.f32.mrf.mxu0
        %v883 = vadd.f32 %v755, %v882
        %v884 = vpop.f32.mrf.mxu0
        %v885 = vadd.f32 %v759, %v884
        %886 = vmatprep.mubr.f32.mxu0 0.0
        %887 = vmatmul.mubr.f32.gmra.mxu0 %v715
        %v888 = vpop.f32.mrf.mxu0
        %v889 = vadd.f32 %v755, %v888
        %v890 = vpop.f32.mrf.mxu0
        %v891 = vadd.f32 %v759, %v890
        %892 = vmatprep.mubr.f32.mxu0 0.0
        %893 = vmatmul.mubr.f32.gmra.mxu0 %v716
        %v894 = vpop.f32.mrf.mxu0
        %v895 = vadd.f32 %v755, %v894
        %v896 = vpop.f32.mrf.mxu0
        %v897 = vadd.f32 %v759, %v896
        %898 = vmatprep.mubr.f32.mxu0 0.0
        %899 = vmatmul.mubr.f32.gmra.mxu0 %v717
        %v900 = vpop.f32.mrf.mxu0
        %v901 = vadd.f32 %v755, %v900
        %v902 = vpop.f32.mrf.mxu0
        %v903 = vadd.f32 %v759, %v902
        %904 = vdwg.mxu0
        %v905 = vtanh.pop %v829
        %v906 = vtanh.pop %v831
        %v907 = vtanh.pop %v835
        %v908 = vtanh.pop %v837
        %v909 = vtanh.pop %v841
        %v910 = vtanh.pop %v843
        %v911 = vtanh.pop %v847
        %v912 = vtanh.pop %v849
        %v913 = vtanh.pop %v853
        %v914 = vtanh.pop %v855
        %v915 = vtanh.pop %v859
        %v916 = vtanh.pop %v861
        %v917 = vtanh.pop %v865
        %v918 = vtanh.pop %v867
        %v919 = vtanh.pop %v871
        %v920 = vtanh.pop %v873
        %v921 = vtanh.pop %v877
        %v922 = vtanh.pop %v879
        %v923 = vtanh.pop %v883
        %v924 = vtanh.pop %v885
        %v925 = vtanh.pop %v889
        %v926 = vtanh.pop %v891
        %v927 = vtanh.pop %v895
        %v928 = vtanh.pop %v897
        %v929 = vtanh.pop %v901
        %v930 = vtanh.pop %v903
        %v931 = vmul.f32 %v905, 4.0
        %v932 = vmul.f32 %v906, 4.0
        %v933 = vmul.f32 %v907, 4.0
        %v934 = vmul.f32 %v908, 4.0
        %v935 = vmul.f32 %v909, 4.0
        %v936 = vmul.f32 %v910, 4.0
        %v937 = vmul.f32 %v911, 4.0
        %v938 = vmul.f32 %v912, 4.0
        %v939 = vmul.f32 %v913, 4.0
        %v940 = vmul.f32 %v914, 4.0
        %v941 = vmul.f32 %v915, 4.0
        %v942 = vmul.f32 %v916, 4.0
        %v943 = vmul.f32 %v917, 4.0
        %v944 = vmul.f32 %v918, 4.0
        %v945 = vmul.f32 %v919, 4.0
        %v946 = vmul.f32 %v920, 4.0
        %v947 = vmul.f32 %v921, 4.0
        %v948 = vmul.f32 %v922, 4.0
        %v949 = vmul.f32 %v923, 4.0
        %v950 = vmul.f32 %v924, 4.0
        %v951 = vmul.f32 %v925, 4.0
        %v952 = vmul.f32 %v926, 4.0
        %v953 = vmul.f32 %v927, 4.0
        %v954 = vmul.f32 %v928, 4.0
        %v955 = vmul.f32 %v929, 4.0
        %v956 = vmul.f32 %v930, 4.0
        %v957 = vadd.f32 %v351, %v931
        %v958 = vadd.f32 %v352, %v932
        %v959 = vadd.f32 %v353, %v933
        %v960 = vadd.f32 %v354, %v934
        %v961 = vadd.f32 %v355, %v935
        %v962 = vadd.f32 %v356, %v936
        %v963 = vadd.f32 %v357, %v937
        %v964 = vadd.f32 %v358, %v938
        %v965 = vadd.f32 %v359, %v939
        %v966 = vadd.f32 %v360, %v940
        %v967 = vadd.f32 %v361, %v941
        %v968 = vadd.f32 %v362, %v942
        %v969 = vadd.f32 %v363, %v943
        %v970 = vadd.f32 %v364, %v944
        %v971 = vadd.f32 %v365, %v945
        %v972 = vadd.f32 %v366, %v946
        %v973 = vadd.f32 %v367, %v947
        %v974 = vadd.f32 %v368, %v948
        %v975 = vadd.f32 %v369, %v949
        %v976 = vadd.f32 %v370, %v950
        %v977 = vadd.f32 %v371, %v951
        %v978 = vadd.f32 %v372, %v952
        %v979 = vadd.f32 %v373, %v953
        %v980 = vadd.f32 %v374, %v954
        %v981 = vadd.f32 %v375, %v955
        %v982 = vadd.f32 %v376, %v956
        %983 = vst [vmem:[%s313] sm:$0xff] %v957
        %984 = vst [vmem:[%s313 + $0x8] sm:$0xff] %v958
        %985 = vst [vmem:[%s313 + $0x10] sm:$0xff] %v959
        %986 = vst [vmem:[%s313 + $0x18] sm:$0xff] %v960
        %987 = vst [vmem:[%s313 + $0x20] sm:$0xff] %v961
        %988 = vst [vmem:[%s313 + $0x28] sm:$0xff] %v962
        %989 = vst [vmem:[%s313 + $0x30] sm:$0xff] %v963
        %990 = vst [vmem:[%s313 + $0x38] sm:$0xff] %v964
        %991 = vst [vmem:[%s313 + $0x40] sm:$0xff] %v965
        %992 = vst [vmem:[%s313 + $0x48] sm:$0xff] %v966
        %993 = vst [vmem:[%s313 + $0x50] sm:$0xff] %v967
        %994 = vst [vmem:[%s313 + $0x58] sm:$0xff] %v968
        %995 = vst [vmem:[%s313 + $0x60] sm:$0xff] %v969
        %996 = vst [vmem:[%s313 + $0x68] sm:$0xff] %v970
        %997 = vst [vmem:[%s313 + $0x70] sm:$0xff] %v971
        %998 = vst [vmem:[%s313 + $0x78] sm:$0xff] %v972
        %999 = vst [vmem:[%s313 + $0x80] sm:$0xff] %v973
        %1000 = vst [vmem:[%s313 + $0x88] sm:$0xff] %v974
        %1001 = vst [vmem:[%s313 + $0x90] sm:$0xff] %v975
        %1002 = vst [vmem:[%s313 + $0x98] sm:$0xff] %v976
        %1003 = vst [vmem:[%s313 + $0xa0] sm:$0xff] %v977
        %1004 = vst [vmem:[%s313 + $0xa8] sm:$0xff] %v978
        %1005 = vst [vmem:[%s313 + $0xb0] sm:$0xff] %v979
        %1006 = vst [vmem:[%s313 + $0xb8] sm:$0xff] %v980
        %1007 = vst [vmem:[%s313 + $0xc0] sm:$0xff] %v981
        %1008 = vst [vmem:[%s313 + $0xc8] sm:$0xff] %v982
        %s1009 = sand.u32 %s183, 1
        %s1010 = sand.u32 %s183, 1
        %s1011 = smul.addr %s1010, 208
        %s1012 = scalar_lea.vmem [#allocation2], %s1011
        // Predicated region
        $region49: #{_gen16_forward_impl.1} parent=47 // pred_check
          %p1013 = pneg %p193
        $region50: #{_gen16_forward_impl.1} parent=47 // pred_check_branch
          %1015 = sbr.rel (%p1013) target = $region52
        $region51: #{_gen16_forward_impl.1} parent=47 // pred_region
          %s1016 = smul.u32 13, %s18
          %s1017 = ssub.s32 25, %s1016
          %p1018 = scmp.lt.s32.totalorder %s1017, 13
          %s1019 = scalar_select %p1018, %s1017, 13
          %s1020 = smul.u32 128, %s1019
          %s1021 = smul.u32 %s1020, 2
          %p1022 = scmp.ne.s32.totalorder 0, %s1021
          %s1023 = smul.addr %s1016, 2
          %s1024 = smul.addr %s1023, 8
          %s1025 = scalar_lea.vmem %s7, %s1024
          // Predicated region
          $region53: #{_gen16_forward_impl.1} parent=51 // pred_check
            %p1026 = pneg %p1022
          $region54: #{_gen16_forward_impl.1} parent=51 // pred_check_branch
            %1028 = sbr.rel (%p1026) target = $region56
          $region55: #{_gen16_forward_impl.1} parent=51 // pred_region
            // Predicated region
            $region57: #{_gen16_forward_impl.1} parent=55 // pred_check
              _
            $region58: #{_gen16_forward_impl.1} parent=55 // pred_check_branch
              %1030 = sbr.rel (0) target = $region60
            $region59: #{_gen16_forward_impl.1} parent=55 // pred_region
              %s1031 = sdiv.u32.pop %s1019, 13
              %s1032 = srem.u32.pop %s1019, 13
              // While loop
              $region61: #{_gen16_forward_impl.1} parent=59 // loop_pre_header
                _
              $region62: #{_gen16_forward_impl.1} parent=59 // loop_header
                %s1034 = sphi 0, %s1036
                %p1035 = scmp.ge.s32.totalorder %s1034, %s1031
                %s1039 = sphi 0, %s1096
                %s1040 = sphi %s1012, %s1099
                %s1041 = sphi %s1025, %s1100
              $region63: #{_gen16_forward_impl.1} parent=59 // loop_header_branch
                %1038 = sbr.rel (%p1035) target = $region67
              $region64: #{_gen16_forward_impl.1} parent=59 // loop_body
                %v1042 = vld [vmem:[%s1040] sm:$0xff]
                %1043 = vst [vmem:[%s1041] sm:$0xff] %v1042
                %v1044 = vld [vmem:[%s1040 + $0x10] sm:$0xff]
                %1045 = vst [vmem:[%s1041 + $0x10] sm:$0xff] %v1044
                %v1046 = vld [vmem:[%s1040 + $0x20] sm:$0xff]
                %1047 = vst [vmem:[%s1041 + $0x20] sm:$0xff] %v1046
                %v1048 = vld [vmem:[%s1040 + $0x30] sm:$0xff]
                %1049 = vst [vmem:[%s1041 + $0x30] sm:$0xff] %v1048
                %v1050 = vld [vmem:[%s1040 + $0x40] sm:$0xff]
                %1051 = vst [vmem:[%s1041 + $0x40] sm:$0xff] %v1050
                %v1052 = vld [vmem:[%s1040 + $0x50] sm:$0xff]
                %1053 = vst [vmem:[%s1041 + $0x50] sm:$0xff] %v1052
                %v1054 = vld [vmem:[%s1040 + $0x60] sm:$0xff]
                %1055 = vst [vmem:[%s1041 + $0x60] sm:$0xff] %v1054
                %v1056 = vld [vmem:[%s1040 + $0x70] sm:$0xff]
                %1057 = vst [vmem:[%s1041 + $0x70] sm:$0xff] %v1056
                %v1058 = vld [vmem:[%s1040 + $0x80] sm:$0xff]
                %1059 = vst [vmem:[%s1041 + $0x80] sm:$0xff] %v1058
                %v1060 = vld [vmem:[%s1040 + $0x90] sm:$0xff]
                %1061 = vst [vmem:[%s1041 + $0x90] sm:$0xff] %v1060
                %v1062 = vld [vmem:[%s1040 + $0xa0] sm:$0xff]
                %1063 = vst [vmem:[%s1041 + $0xa0] sm:$0xff] %v1062
                %v1064 = vld [vmem:[%s1040 + $0xb0] sm:$0xff]
                %1065 = vst [vmem:[%s1041 + $0xb0] sm:$0xff] %v1064
                %v1066 = vld [vmem:[%s1040 + $0xc0] sm:$0xff]
                %1067 = vst [vmem:[%s1041 + $0xc0] sm:$0xff] %v1066
                %v1068 = vld [vmem:[%s1040 + $0x8] sm:$0xff]
                %1069 = vst [vmem:[%s1041 + $0x8] sm:$0xff] %v1068
                %v1070 = vld [vmem:[%s1040 + $0x18] sm:$0xff]
                %1071 = vst [vmem:[%s1041 + $0x18] sm:$0xff] %v1070
                %v1072 = vld [vmem:[%s1040 + $0x28] sm:$0xff]
                %1073 = vst [vmem:[%s1041 + $0x28] sm:$0xff] %v1072
                %v1074 = vld [vmem:[%s1040 + $0x38] sm:$0xff]
                %1075 = vst [vmem:[%s1041 + $0x38] sm:$0xff] %v1074
                %v1076 = vld [vmem:[%s1040 + $0x48] sm:$0xff]
                %1077 = vst [vmem:[%s1041 + $0x48] sm:$0xff] %v1076
                %v1078 = vld [vmem:[%s1040 + $0x58] sm:$0xff]
                %1079 = vst [vmem:[%s1041 + $0x58] sm:$0xff] %v1078
                %v1080 = vld [vmem:[%s1040 + $0x68] sm:$0xff]
                %1081 = vst [vmem:[%s1041 + $0x68] sm:$0xff] %v1080
                %v1082 = vld [vmem:[%s1040 + $0x78] sm:$0xff]
                %1083 = vst [vmem:[%s1041 + $0x78] sm:$0xff] %v1082
                %v1084 = vld [vmem:[%s1040 + $0x88] sm:$0xff]
                %1085 = vst [vmem:[%s1041 + $0x88] sm:$0xff] %v1084
                %v1086 = vld [vmem:[%s1040 + $0x98] sm:$0xff]
                %1087 = vst [vmem:[%s1041 + $0x98] sm:$0xff] %v1086
                %v1088 = vld [vmem:[%s1040 + $0xa8] sm:$0xff]
                %1089 = vst [vmem:[%s1041 + $0xa8] sm:$0xff] %v1088
                %v1090 = vld [vmem:[%s1040 + $0xb8] sm:$0xff]
                %1091 = vst [vmem:[%s1041 + $0xb8] sm:$0xff] %v1090
                %v1092 = vld [vmem:[%s1040 + $0xc8] sm:$0xff]
                %1093 = vst [vmem:[%s1041 + $0xc8] sm:$0xff] %v1092
                %s1094 = sadd.s32 1, %s1039
                %p1095 = scmp.ge.s32.totalorder %s1094, %s1031
                %s1096 = scalar_select %p1095, 0, %s1094
                %s1097 = smul.u32 %s1096, 208
                %s1098 = smul.u32 %s1096, 208
                %s1099 = scalar_lea.vmem %s1012, %s1097 [#allocation2]
                %s1100 = scalar_lea.vmem %s1025, %s1098
              $region65: #{_gen16_forward_impl.1} parent=59 // loop_footer
                %s1036 = sadd.s32 %s1034, 1
              $region66: #{_gen16_forward_impl.1} parent=59 // loop_footer_branch
                %1033 = sbr.rel target = $region62
              $region67: #{_gen16_forward_impl.1} parent=59 // loop_exit
                _
              %s1101 = sdiv.u32.pop %s1019, 13
              %s1102 = srem.u32.pop %s1019, 13
              %s1103 = smul.u32 %s1101, 13
              %s1104 = smul.u32 16, %s1103
              %s1105 = scalar_lea.vmem %s1012, %s1104 [#allocation2]
              %s1106 = smul.u32 16, %s1103
              %s1107 = scalar_lea.vmem %s1025, %s1106
              // While loop
              $region68: #{_gen16_forward_impl.1} parent=59 // loop_pre_header
                _
              $region69: #{_gen16_forward_impl.1} parent=59 // loop_header
                %s1109 = sphi 0, %s1111
                %p1110 = scmp.ge.s32.totalorder %s1109, %s1102
                %s1114 = sphi 0, %s1123
                %s1115 = sphi %s1105, %s1126
                %s1116 = sphi %s1107, %s1127
              $region70: #{_gen16_forward_impl.1} parent=59 // loop_header_branch
                %1113 = sbr.rel (%p1110) target = $region74
              $region71: #{_gen16_forward_impl.1} parent=59 // loop_body
                %v1117 = vld [vmem:[%s1115] sm:$0xff]
                %1118 = vst [vmem:[%s1116] sm:$0xff] %v1117
                %v1119 = vld [vmem:[%s1115 + $0x8] sm:$0xff]
                %1120 = vst [vmem:[%s1116 + $0x8] sm:$0xff] %v1119
                %s1121 = sadd.s32 1, %s1114
                %p1122 = scmp.ge.s32.totalorder %s1121, %s1102
                %s1123 = scalar_select %p1122, 0, %s1121
                %s1124 = smul.u32 %s1123, 16
                %s1125 = smul.u32 %s1123, 16
                %s1126 = scalar_lea.vmem %s1105, %s1124 [#allocation2]
                %s1127 = scalar_lea.vmem %s1107, %s1125
              $region72: #{_gen16_forward_impl.1} parent=59 // loop_footer
                %s1111 = sadd.s32 %s1109, 1
              $region73: #{_gen16_forward_impl.1} parent=59 // loop_footer_branch
                %1108 = sbr.rel target = $region69
              $region74: #{_gen16_forward_impl.1} parent=59 // loop_exit
                _
            $region60: #{_gen16_forward_impl.1} parent=55 // pred_fallthru
              _
            // Predicated region
            $region75: #{_gen16_forward_impl.1} parent=55 // pred_check
              _
            $region76: #{_gen16_forward_impl.1} parent=55 // pred_check_branch
              %1129 = sbr.rel target = $region78
            $region77: #{_gen16_forward_impl.1} parent=55 // pred_region
              _
            $region78: #{_gen16_forward_impl.1} parent=55 // pred_fallthru
              _
          $region56: #{_gen16_forward_impl.1} parent=51 // pred_fallthru
            _
          %1130 = vnop
        $region52: #{_gen16_forward_impl.1} parent=47 // pred_fallthru
          _
      $region48: #{_gen16_forward_impl.1} parent=5 // pred_fallthru
        _
      %p1131 = scmp.le.s32.totalorder 2, %s13
      // Predicated region
      $region79: #{_gen16_forward_impl.1} parent=5 // pred_check
        %p1132 = pneg %p1131
      $region80: #{_gen16_forward_impl.1} parent=5 // pred_check_branch
        %1134 = sbr.rel (%p1132) target = $region82
      $region81: #{_gen16_forward_impl.1} parent=5 // pred_region
        %s1135 = ssub.s32 %s13, 2
        // Predicated region
        $region83: #{_gen16_forward_impl.1} parent=81 // pred_check
          %p1136 = pneg %p199
        $region84: #{_gen16_forward_impl.1} parent=81 // pred_check_branch
          %1138 = sbr.rel (%p1136) target = $region86
        $region85: #{_gen16_forward_impl.1} parent=81 // pred_region
          %s1139 = sand.u32 %s184, 1
          %s1140 = sand.u32 %s184, 1
          %s1141 = smul.addr %s1140, 208
          %s1142 = scalar_lea.vmem [#allocation2], %s1141
        $region86: #{_gen16_forward_impl.1} parent=81 // pred_fallthru
          _
      $region82: #{_gen16_forward_impl.1} parent=5 // pred_fallthru
        _
    $region6: #{_gen16_forward_impl.1} parent=1 // loop_footer
      %s17 = sadd.s32 1, %s13
    $region7: #{_gen16_forward_impl.1} parent=1 // loop_footer_branch
      %12 = sbr.rel target = $region3
    $region8: #{_gen16_forward_impl.1} parent=1 // loop_exit
      _

</llo_original>
